<compile_context>
chip_gen: v7x
topology: tpu7x:2x2x1
jax: 0.10.0
libtpu: 0.0.40
codegen_flags: <defaults>
</compile_context>

<pallas_src>
import jax
import jax.numpy as jnp
from jax import lax
from jax.experimental import pallas as pl
from jax.experimental.pallas import tpu as pltpu

FEATURE_SIZE = 1000
K_PAD = 1024            # 1000 padded up to a multiple of 128
H1, H2, H3 = 512, 256, 256
BN_EPS = 1e-5


def _bn_relu(h):
    """Training-mode BatchNorm1d (gamma=1, beta=0) + ReLU, one-pass stats."""
    mean = jnp.mean(h, axis=0, keepdims=True)
    msq = jnp.mean(h * h, axis=0, keepdims=True)
    var = jnp.maximum(msq - mean * mean, 0.0)   # clamp: no rsqrt(neg) -> NaN
    return jnp.maximum((h - mean) * lax.rsqrt(var + BN_EPS), 0.0)


def encoder_kernel(x_ref, w1_ref, w2_ref, w3_ref, b3_ref, out_ref):
    # ---- Linear(1024 -> 512, int8 weights, bias cancelled by BN) + BN + ReLU
    # Per-column int8 dequant scale intentionally NOT applied (cancelled by BN).
    h = jnp.dot(x_ref[...], w1_ref[...].astype(jnp.bfloat16),
                preferred_element_type=jnp.float32)
    h = _bn_relu(h)

    # ---- Linear(512 -> 256, int8 weights, bias cancelled by BN) + BN + ReLU
    h = jnp.dot(h.astype(jnp.bfloat16), w2_ref[...].astype(jnp.bfloat16),
                preferred_element_type=jnp.float32)
    h = _bn_relu(h)

    # ---- Linear(256 -> 256, bf16 weights) + bias + Tanh ----
    h = jnp.dot(h.astype(jnp.bfloat16), w3_ref[...],
                preferred_element_type=jnp.float32) + b3_ref[...]
    out_ref[...] = jnp.tanh(h).astype(out_ref.dtype)


def _quantize_cols_int8(w):
    """Per-output-column abs-max int8 quantization. Returns (int8 weights, scale)."""
    amax = jnp.max(jnp.abs(w), axis=0, keepdims=True)
    scale = jnp.where(amax > 0, amax, 1.0) / 127.0
    q = jnp.clip(jnp.round(w / scale), -127.0, 127.0).astype(jnp.int8)
    return q, scale


def init_params(key):
    """PyTorch-style uniform(-1/sqrt(fan_in), ...) init.

    w1/w2 stored int8 (scale kept only for the pure-JAX reference); w3 bf16.
    """
    ks = jax.random.split(key, 6)

    def lin(kw, kb, fan_in, fan_out):
        bound = 1.0 / float(fan_in) ** 0.5
        # stored as [in, out] (transpose of PyTorch's [out, in])
        w = jax.random.uniform(kw, (fan_in, fan_out), jnp.float32, -bound, bound)
        b = jax.random.uniform(kb, (1, fan_out), jnp.float32, -bound, bound)
        return w, b

    # b1/b2 are generated for RNG parity with the original module but are not
    # used (exactly cancelled by training-mode BatchNorm's mean subtraction).
    w1f, _b1 = lin(ks[0], ks[1], FEATURE_SIZE, H1)
    w2f, _b2 = lin(ks[2], ks[3], H1, H2)
    w3f, b3 = lin(ks[4], ks[5], H2, H3)

    w1q, s1 = _quantize_cols_int8(w1f)
    w1q = jnp.pad(w1q, ((0, K_PAD - FEATURE_SIZE), (0, 0)))   # zero rows: exact
    w2q, s2 = _quantize_cols_int8(w2f)

    return {
        "w1q": w1q, "s1": s1,          # s1/s2 only used by the reference
        "w2q": w2q, "s2": s2,
        "w3": w3f.astype(jnp.bfloat16),
        "b3": b3,
    }


def encoder_forward(x, params):
    # glue: x.squeeze() as in the PyTorch forward, but never drop the batch axis
    squeeze_axes = tuple(i for i in range(1, x.ndim) if x.shape[i] == 1)
    x2d = jnp.squeeze(x, axis=squeeze_axes) if squeeze_axes else x
    assert x2d.ndim == 2 and x2d.shape[-1] == FEATURE_SIZE
    B = x2d.shape[0]
    # Whole-batch single block preserves exact training-mode BN statistics.
    # Above this ceiling (re-derived for v7x's 64 MiB VMEM) a two-pass
    # (stats pass, then apply pass) batch-tiled variant would be required.
    assert B <= 2048, "batch too large for the single-block whole-batch BN kernel"

    # bf16 activations into the MXU; zero-pad K 1000 -> 1024 (dense vregs).
    # At these sizes this is one tiny fused XLA op.
    # TODO(synk): for large B, fold the cast+pad into the kernel (zero-filled
    # VMEM scratch) to avoid the extra HBM round-trip over x.
    x2d = jnp.pad(x2d.astype(jnp.bfloat16), ((0, 0), (0, K_PAD - FEATURE_SIZE)))

    w1q, w2q, w3, b3 = params["w1q"], params["w2q"], params["w3"], params["b3"]

    flops = 2 * B * (K_PAD * H1 + H1 * H2 + H2 * H3)
    bytes_accessed = (
        K_PAD * H1 + H1 * H2            # int8 w1, w2
        + 2 * H2 * H3                   # bf16 w3
        + 4 * H3                        # f32 b3
        + 2 * B * K_PAD                 # bf16 input
        + 4 * B * H3                    # f32 output
    )
    transcendentals = B * H3 + H1 + H2  # tanh + rsqrt

    # Actual footprint: ~0.77 MiB weights + a few KiB/row of activations.
    vmem_limit = 6 * 1024 * 1024 + B * 12 * 1024

    # TODO(synk): when this encoder runs back-to-back with other layers, hide the
    # ~0.7 MiB weight DMA via cross-pallas_call prefetch (SEMAPHORE + VMEM
    # outputs, has_side_effects=True); on v7x, shard each layer's output-feature
    # axis across the 2 TensorCores (BN stats are per-feature, so halves are
    # independent).
    return pl.pallas_call(
        encoder_kernel,
        out_shape=jax.ShapeDtypeStruct((B, H3), jnp.float32),
        in_specs=[pl.BlockSpec(memory_space=pltpu.MemorySpace.VMEM)] * 5,
        out_specs=pl.BlockSpec(memory_space=pltpu.MemorySpace.VMEM),
        cost_estimate=pl.CostEstimate(
            flops=flops,
            transcendentals=transcendentals,
            bytes_accessed=bytes_accessed),
        compiler_params=pltpu.CompilerParams(vmem_limit_bytes=vmem_limit),
    )(x2d, w1q, w2q, w3, b3)


def encoder_ref(x, params):
    """Pure-JAX f32 reference using the *dequantized* int8 weights."""
    squeeze_axes = tuple(i for i in range(1, x.ndim) if x.shape[i] == 1)
    h = (jnp.squeeze(x, axis=squeeze_axes) if squeeze_axes else x).astype(jnp.float32)

    w1 = params["w1q"][:FEATURE_SIZE].astype(jnp.float32) * params["s1"]
    w2 = params["w2q"].astype(jnp.float32) * params["s2"]
    w3 = params["w3"].astype(jnp.float32)
    b3 = params["b3"]

    def bn(h):
        m = jnp.mean(h, 0, keepdims=True)
        v = jnp.mean((h - m) ** 2, 0, keepdims=True)
        return (h - m) / jnp.sqrt(v + BN_EPS)

    h = jnp.maximum(bn(h @ w1), 0.0)
    h = jnp.maximum(bn(h @ w2), 0.0)
    return jnp.tanh(h @ w3 + b3)


if __name__ == "__main__":
    key = jax.random.PRNGKey(0)
    k_x, k_p = jax.random.split(key)

    # bf16 vregs are [16,128] sublanes -> B=16 packs sublanes fully and
    # amortizes the fixed per-call overhead and weight DMA.
    B = 16
    # module does x.squeeze(): feed a [B, 1, 1000] input
    x = jax.random.normal(k_x, (B, 1, FEATURE_SIZE), jnp.float32)
    params = init_params(k_p)

    out = encoder_forward(x, params)
    out = jax.block_until_ready(out)

    ref = encoder_ref(x, params)
    assert out.shape == (B, H3)
    # bf16 activation rounding inside the kernel (and eps-in-BN ~1e-5 from the
    # un-applied int8 column scale) vs the f32 reference -> loose tolerance.
    assert jnp.allclose(out, ref, atol=3e-2, rtol=3e-2), (
        float(jnp.max(jnp.abs(out - ref))))

    print("KERNEL_OK")
</pallas_src>

<mosaic_0001>
module attributes {stable_mosaic.version = 11 : i64} {
  func.func @encoder_kernel(%arg0: memref<16x1024xbf16, #tpu.memory_space<vmem>>, %arg1: memref<1024x512xi8, #tpu.memory_space<vmem>>, %arg2: memref<512x256xi8, #tpu.memory_space<vmem>>, %arg3: memref<256x256xbf16, #tpu.memory_space<vmem>>, %arg4: memref<1x256xf32, #tpu.memory_space<vmem>>, %arg5: memref<16x256xf32, #tpu.memory_space<vmem>>) attributes {dimension_semantics = [], scalar_prefetch = 0 : i64, scratch_operands = 0 : i64, tpu.core_type = #tpu.core_type<tc>} {
    %c0 = arith.constant 0 : index
    %c0_0 = arith.constant 0 : index
    %0 = vector.load %arg0[%c0, %c0_0] : memref<16x1024xbf16, #tpu.memory_space<vmem>>, vector<16x1024xbf16>
    %c0_1 = arith.constant 0 : index
    %c0_2 = arith.constant 0 : index
    %1 = vector.load %arg1[%c0_1, %c0_2] : memref<1024x512xi8, #tpu.memory_space<vmem>>, vector<1024x512xi8>
    %2 = arith.sitofp %1 : vector<1024x512xi8> to vector<1024x512xbf16>
    %cst = arith.constant dense<0.000000e+00> : vector<16x512xf32>
    %3 = tpu.matmul %0, %2, %cst {dimension_numbers = #tpu.dot_dimension_numbers<[1], [0], [0], [1], [0, 0, 1, 1], [], []>} : vector<16x1024xbf16>, vector<1024x512xbf16>, vector<16x512xf32> -> vector<16x512xf32>
    %cst_3 = arith.constant dense<0.000000e+00> : vector<512xf32>
    %4 = vector.multi_reduction <add>, %3, %cst_3 [0] : vector<16x512xf32> to vector<512xf32>
    %5 = vector.shape_cast %4 : vector<512xf32> to vector<1x512xf32>
    %cst_4 = arith.constant 1.600000e+01 : f32
    %6 = vector.broadcast %cst_4 : f32 to vector<1x512xf32>
    %7 = arith.divf %5, %6 : vector<1x512xf32>
    %8 = arith.mulf %3, %3 : vector<16x512xf32>
    %cst_5 = arith.constant dense<0.000000e+00> : vector<512xf32>
    %9 = vector.multi_reduction <add>, %8, %cst_5 [0] : vector<16x512xf32> to vector<512xf32>
    %10 = vector.shape_cast %9 : vector<512xf32> to vector<1x512xf32>
    %cst_6 = arith.constant 1.600000e+01 : f32
    %11 = vector.broadcast %cst_6 : f32 to vector<1x512xf32>
    %12 = arith.divf %10, %11 : vector<1x512xf32>
    %13 = arith.mulf %7, %7 : vector<1x512xf32>
    %14 = arith.subf %12, %13 : vector<1x512xf32>
    %cst_7 = arith.constant 0.000000e+00 : f32
    %15 = vector.broadcast %cst_7 : f32 to vector<1x512xf32>
    %16 = arith.maximumf %14, %15 : vector<1x512xf32>
    %17 = vector.broadcast %7 : vector<1x512xf32> to vector<16x512xf32>
    %18 = arith.subf %3, %17 : vector<16x512xf32>
    %cst_8 = arith.constant 9.99999974E-6 : f32
    %19 = vector.broadcast %cst_8 : f32 to vector<1x512xf32>
    %20 = arith.addf %16, %19 : vector<1x512xf32>
    %21 = math.rsqrt %20 : vector<1x512xf32>
    %22 = vector.broadcast %21 : vector<1x512xf32> to vector<16x512xf32>
    %23 = arith.mulf %18, %22 : vector<16x512xf32>
    %cst_9 = arith.constant 0.000000e+00 : f32
    %24 = vector.broadcast %cst_9 : f32 to vector<16x512xf32>
    %25 = arith.maximumf %23, %24 : vector<16x512xf32>
    %26 = arith.truncf %25 : vector<16x512xf32> to vector<16x512xbf16>
    %c0_10 = arith.constant 0 : index
    %c0_11 = arith.constant 0 : index
    %27 = vector.load %arg2[%c0_10, %c0_11] : memref<512x256xi8, #tpu.memory_space<vmem>>, vector<512x256xi8>
    %28 = arith.sitofp %27 : vector<512x256xi8> to vector<512x256xbf16>
    %cst_12 = arith.constant dense<0.000000e+00> : vector<16x256xf32>
    %29 = tpu.matmul %26, %28, %cst_12 {dimension_numbers = #tpu.dot_dimension_numbers<[1], [0], [0], [1], [0, 0, 1, 1], [], []>} : vector<16x512xbf16>, vector<512x256xbf16>, vector<16x256xf32> -> vector<16x256xf32>
    %cst_13 = arith.constant dense<0.000000e+00> : vector<256xf32>
    %30 = vector.multi_reduction <add>, %29, %cst_13 [0] : vector<16x256xf32> to vector<256xf32>
    %31 = vector.shape_cast %30 : vector<256xf32> to vector<1x256xf32>
    %cst_14 = arith.constant 1.600000e+01 : f32
    %32 = vector.broadcast %cst_14 : f32 to vector<1x256xf32>
    %33 = arith.divf %31, %32 : vector<1x256xf32>
    %34 = arith.mulf %29, %29 : vector<16x256xf32>
    %cst_15 = arith.constant dense<0.000000e+00> : vector<256xf32>
    %35 = vector.multi_reduction <add>, %34, %cst_15 [0] : vector<16x256xf32> to vector<256xf32>
    %36 = vector.shape_cast %35 : vector<256xf32> to vector<1x256xf32>
    %cst_16 = arith.constant 1.600000e+01 : f32
    %37 = vector.broadcast %cst_16 : f32 to vector<1x256xf32>
    %38 = arith.divf %36, %37 : vector<1x256xf32>
    %39 = arith.mulf %33, %33 : vector<1x256xf32>
    %40 = arith.subf %38, %39 : vector<1x256xf32>
    %cst_17 = arith.constant 0.000000e+00 : f32
    %41 = vector.broadcast %cst_17 : f32 to vector<1x256xf32>
    %42 = arith.maximumf %40, %41 : vector<1x256xf32>
    %43 = vector.broadcast %33 : vector<1x256xf32> to vector<16x256xf32>
    %44 = arith.subf %29, %43 : vector<16x256xf32>
    %cst_18 = arith.constant 9.99999974E-6 : f32
    %45 = vector.broadcast %cst_18 : f32 to vector<1x256xf32>
    %46 = arith.addf %42, %45 : vector<1x256xf32>
    %47 = math.rsqrt %46 : vector<1x256xf32>
    %48 = vector.broadcast %47 : vector<1x256xf32> to vector<16x256xf32>
    %49 = arith.mulf %44, %48 : vector<16x256xf32>
    %cst_19 = arith.constant 0.000000e+00 : f32
    %50 = vector.broadcast %cst_19 : f32 to vector<16x256xf32>
    %51 = arith.maximumf %49, %50 : vector<16x256xf32>
    %52 = arith.truncf %51 : vector<16x256xf32> to vector<16x256xbf16>
    %c0_20 = arith.constant 0 : index
    %c0_21 = arith.constant 0 : index
    %53 = vector.load %arg3[%c0_20, %c0_21] : memref<256x256xbf16, #tpu.memory_space<vmem>>, vector<256x256xbf16>
    %cst_22 = arith.constant dense<0.000000e+00> : vector<16x256xf32>
    %54 = tpu.matmul %52, %53, %cst_22 {dimension_numbers = #tpu.dot_dimension_numbers<[1], [0], [0], [1], [0, 0, 1, 1], [], []>} : vector<16x256xbf16>, vector<256x256xbf16>, vector<16x256xf32> -> vector<16x256xf32>
    %c0_23 = arith.constant 0 : index
    %c0_24 = arith.constant 0 : index
    %55 = vector.load %arg4[%c0_23, %c0_24] : memref<1x256xf32, #tpu.memory_space<vmem>>, vector<1x256xf32>
    %56 = vector.broadcast %55 : vector<1x256xf32> to vector<16x256xf32>
    %57 = arith.addf %54, %56 : vector<16x256xf32>
    %58 = math.tanh %57 : vector<16x256xf32>
    %c0_25 = arith.constant 0 : index
    %c0_26 = arith.constant 0 : index
    %59 = vector.load %arg5[%c0_25, %c0_26] : memref<16x256xf32, #tpu.memory_space<vmem>>, vector<16x256xf32>
    tpu.vector_store %arg5[%c0_25, %c0_26], %58 {strides = array<i32>} : memref<16x256xf32, #tpu.memory_space<vmem>>, vector<16x256xf32>,
    return
  }
}

</mosaic_0001>

<llo_original>
// kernel: tpu_custom_call.1
$region0: #{tpu_custom_call.1}
  #allocation0 [shape = 'u32[]', space=smem, size = 0x4, offset = 0x4, fixed_abs, tag = 'smem constant byte address 0x4 - core index']
  #allocation1 [shape = 'u32[144,128]{1,0:T(1,128)}', space=vmem, size = 0x12000, scoped, tag = 'internal scratch']
  %s0 = inlined_call_operand.hbm [shape: bf16[16,1024], index: 0, kind: input, shape index: {}]
  %s1 = inlined_call_operand.hbm [shape: s8[1024,512], index: 1, kind: input, shape index: {}]
  %s2 = inlined_call_operand.hbm [shape: s8[512,256], index: 2, kind: input, shape index: {}]
  %s3 = inlined_call_operand.hbm [shape: bf16[256,256], index: 3, kind: input, shape index: {}]
  %s4 = inlined_call_operand.vmem [shape: f32[1,256], index: 4, kind: input, shape index: {}]
  %s5 = inlined_call_operand.hbm [shape: f32[16,256], index: 5, kind: output, shape index: {}]
  %s6 = sld [smem:[#allocation0]]
  $region46: #{tpu_custom_call.1} parent=0
    _
  %s8 = ssub.s32 1, %s6
  %s9 = scalar_select 0, %s8, %s6
  $region1: #{tpu_custom_call.1} parent=0
    #allocation2 [shape = 'u8[32768]{0}', space=vmem, size = 0x8000, scoped, tag = 'input window, operand 0, single buffered']
    #allocation3 [shape = 's32[1]{0}', space=sflag, size = 0x4, scoped, tag = 'scoped memory for tpu_custom_call.1']
    #allocation4 [shape = 's32[1]{0}', space=sflag, size = 0x4, scoped, tag = 'scoped memory for tpu_custom_call.1']
    #allocation5 [shape = 'u8[524288]{0}', space=vmem, size = 0x80000, scoped, tag = 'input window, operand 1, single buffered']
    #allocation6 [shape = 's32[1]{0}', space=sflag, size = 0x4, scoped, tag = 'scoped memory for tpu_custom_call.1']
    #allocation7 [shape = 'u8[131072]{0}', space=vmem, size = 0x20000, scoped, tag = 'input window, operand 2, single buffered']
    #allocation8 [shape = 'u8[131072]{0}', space=vmem, size = 0x20000, scoped, tag = 'input window, operand 3, single buffered']
    #allocation9 [shape = 's32[1]{0}', space=sflag, size = 0x4, scoped, tag = 'scoped memory for tpu_custom_call.1']
    #allocation10 [shape = 'u8[16384]{0}', space=vmem, size = 0x4000, scoped, tag = 'output window, operand 0, single buffered']
    %10 = vsyncpa [#allocation3], 0
    %11 = vsyncpa [#allocation6], 0
    %12 = vsyncpa [#allocation9], 0
    %13 = vsyncpa [#allocation4], 0
    // Predicated region
    $region2: #{tpu_custom_call.1} parent=1 // pred_check
      _
    $region3: #{tpu_custom_call.1} parent=1 // pred_check_branch
      %15 = sbr.rel (0) target = $region5
    $region4: #{tpu_custom_call.1} parent=1 // pred_region
      %s17 = ssub.s32 1024, 1024
      %18 = vsyncadd [#allocation3], %s17
      %s19 = sshll.u32 [#allocation2], 4
      %s20 = int_to_ptr.vmem [resolvable:$true] %s19
      %25 = dma.hbm_to_vmem [thread:$0]  %s0, 1024, %s20, [#allocation3], 512, 512, 32
    $region5: #{tpu_custom_call.1} parent=1 // pred_fallthru
      _
    // Predicated region
    $region6: #{tpu_custom_call.1} parent=1 // pred_check
      _
    $region7: #{tpu_custom_call.1} parent=1 // pred_check_branch
      %27 = sbr.rel (0) target = $region9
    $region8: #{tpu_custom_call.1} parent=1 // pred_region
      %s29 = ssub.s32 16384, 16384
      %30 = vsyncadd [#allocation6], %s29
      %s31 = sshll.u32 [#allocation5], 4
      %s32 = int_to_ptr.vmem [resolvable:$true] %s31
      %37 = dma.hbm_to_vmem [thread:$0]  %s1, 16384, %s32, [#allocation6], 512, 512, 32
    $region9: #{tpu_custom_call.1} parent=1 // pred_fallthru
      _
    // Predicated region
    $region10: #{tpu_custom_call.1} parent=1 // pred_check
      _
    $region11: #{tpu_custom_call.1} parent=1 // pred_check_branch
      %39 = sbr.rel (0) target = $region13
    $region12: #{tpu_custom_call.1} parent=1 // pred_region
      %s41 = ssub.s32 4096, 4096
      %42 = vsyncadd [#allocation6], %s41
      %s43 = sshll.u32 [#allocation7], 4
      %s44 = int_to_ptr.vmem [resolvable:$true] %s43
      %49 = dma.hbm_to_vmem [thread:$0]  %s2, 4096, %s44, [#allocation6], 256, 256, 16
    $region13: #{tpu_custom_call.1} parent=1 // pred_fallthru
      _
    // Predicated region
    $region14: #{tpu_custom_call.1} parent=1 // pred_check
      _
    $region15: #{tpu_custom_call.1} parent=1 // pred_check_branch
      %51 = sbr.rel (0) target = $region17
    $region16: #{tpu_custom_call.1} parent=1 // pred_region
      %s53 = ssub.s32 4096, 4096
      %54 = vsyncadd [#allocation9], %s53
      %s55 = sshll.u32 [#allocation8], 4
      %s56 = int_to_ptr.vmem [resolvable:$true] %s55
      %61 = dma.hbm_to_vmem [thread:$0]  %s3, 4096, %s56, [#allocation9], 128, 128, 8
    $region17: #{tpu_custom_call.1} parent=1 // pred_fallthru
      _
    // Predicated region
    $region18: #{tpu_custom_call.1} parent=1 // pred_check
      _
    $region19: #{tpu_custom_call.1} parent=1 // pred_check_branch
      %63 = sbr.rel (0) target = $region21
    $region20: #{tpu_custom_call.1} parent=1 // pred_region
      _
    $region21: #{tpu_custom_call.1} parent=1 // pred_fallthru
      _
    // Predicated region
    $region22: #{tpu_custom_call.1} parent=1 // pred_check
      _
    $region23: #{tpu_custom_call.1} parent=1 // pred_check_branch
      %65 = sbr.rel (0) target = $region25
    $region24: #{tpu_custom_call.1} parent=1 // pred_region
      %66 = dma.done [#allocation3], 1024
    $region25: #{tpu_custom_call.1} parent=1 // pred_fallthru
      _
    // Predicated region
    $region26: #{tpu_custom_call.1} parent=1 // pred_check
      _
    $region27: #{tpu_custom_call.1} parent=1 // pred_check_branch
      %68 = sbr.rel (0) target = $region29
    $region28: #{tpu_custom_call.1} parent=1 // pred_region
      %69 = dma.done [#allocation6], 16384
    $region29: #{tpu_custom_call.1} parent=1 // pred_fallthru
      _
    // Predicated region
    $region30: #{tpu_custom_call.1} parent=1 // pred_check
      _
    $region31: #{tpu_custom_call.1} parent=1 // pred_check_branch
      %71 = sbr.rel (0) target = $region33
    $region32: #{tpu_custom_call.1} parent=1 // pred_region
      %72 = dma.done [#allocation6], 4096
    $region33: #{tpu_custom_call.1} parent=1 // pred_fallthru
      _
    // Predicated region
    $region34: #{tpu_custom_call.1} parent=1 // pred_check
      _
    $region35: #{tpu_custom_call.1} parent=1 // pred_check_branch
      %74 = sbr.rel (0) target = $region37
    $region36: #{tpu_custom_call.1} parent=1 // pred_region
      %75 = dma.done [#allocation9], 4096
    $region37: #{tpu_custom_call.1} parent=1 // pred_fallthru
      _
    %v76 = vld [vmem:[#allocation2] sm:$0xff]
    %v77 = vld [vmem:[#allocation2 + $0x8] sm:$0xff]
    %v78 = vld [vmem:[#allocation2 + $0x10] sm:$0xff]
    %v79 = vld [vmem:[#allocation2 + $0x18] sm:$0xff]
    %v80 = vld [vmem:[#allocation2 + $0x20] sm:$0xff]
    %v81 = vld [vmem:[#allocation2 + $0x28] sm:$0xff]
    %v82 = vld [vmem:[#allocation2 + $0x30] sm:$0xff]
    %v83 = vld [vmem:[#allocation2 + $0x38] sm:$0xff]
    %v84 = vld [vmem:[#allocation5] sm:$0xff]
    %v85 = vld [vmem:[#allocation5 + $0x8] sm:$0xff]
    %v86 = vld [vmem:[#allocation5 + $0x10] sm:$0xff]
    %v87 = vld [vmem:[#allocation5 + $0x18] sm:$0xff]
    %v88 = vld [vmem:[#allocation5 + $0x20] sm:$0xff]
    %v89 = vld [vmem:[#allocation5 + $0x28] sm:$0xff]
    %v90 = vld [vmem:[#allocation5 + $0x30] sm:$0xff]
    %v91 = vld [vmem:[#allocation5 + $0x38] sm:$0xff]
    %v92 = vld [vmem:[#allocation5 + $0x40] sm:$0xff]
    %v93 = vld [vmem:[#allocation5 + $0x48] sm:$0xff]
    %v94 = vld [vmem:[#allocation5 + $0x50] sm:$0xff]
    %v95 = vld [vmem:[#allocation5 + $0x58] sm:$0xff]
    %v96 = vld [vmem:[#allocation5 + $0x60] sm:$0xff]
    %v97 = vld [vmem:[#allocation5 + $0x68] sm:$0xff]
    %v98 = vld [vmem:[#allocation5 + $0x70] sm:$0xff]
    %v99 = vld [vmem:[#allocation5 + $0x78] sm:$0xff]
    %v100 = vld [vmem:[#allocation5 + $0x80] sm:$0xff]
    %v101 = vld [vmem:[#allocation5 + $0x88] sm:$0xff]
    %v102 = vld [vmem:[#allocation5 + $0x90] sm:$0xff]
    %v103 = vld [vmem:[#allocation5 + $0x98] sm:$0xff]
    %v104 = vld [vmem:[#allocation5 + $0xa0] sm:$0xff]
    %v105 = vld [vmem:[#allocation5 + $0xa8] sm:$0xff]
    %v106 = vld [vmem:[#allocation5 + $0xb0] sm:$0xff]
    %v107 = vld [vmem:[#allocation5 + $0xb8] sm:$0xff]
    %v108 = vld [vmem:[#allocation5 + $0xc0] sm:$0xff]
    %v109 = vld [vmem:[#allocation5 + $0xc8] sm:$0xff]
    %v110 = vld [vmem:[#allocation5 + $0xd0] sm:$0xff]
    %v111 = vld [vmem:[#allocation5 + $0xd8] sm:$0xff]
    %v112 = vld [vmem:[#allocation5 + $0xe0] sm:$0xff]
    %v113 = vld [vmem:[#allocation5 + $0xe8] sm:$0xff]
    %v114 = vld [vmem:[#allocation5 + $0xf0] sm:$0xff]
    %v115 = vld [vmem:[#allocation5 + $0xf8] sm:$0xff]
    %v116 = vld [vmem:[#allocation5 + $0x100] sm:$0xff]
    %v117 = vld [vmem:[#allocation5 + $0x108] sm:$0xff]
    %v118 = vld [vmem:[#allocation5 + $0x110] sm:$0xff]
    %v119 = vld [vmem:[#allocation5 + $0x118] sm:$0xff]
    %v120 = vld [vmem:[#allocation5 + $0x120] sm:$0xff]
    %v121 = vld [vmem:[#allocation5 + $0x128] sm:$0xff]
    %v122 = vld [vmem:[#allocation5 + $0x130] sm:$0xff]
    %v123 = vld [vmem:[#allocation5 + $0x138] sm:$0xff]
    %v124 = vld [vmem:[#allocation5 + $0x140] sm:$0xff]
    %v125 = vld [vmem:[#allocation5 + $0x148] sm:$0xff]
    %v126 = vld [vmem:[#allocation5 + $0x150] sm:$0xff]
    %v127 = vld [vmem:[#allocation5 + $0x158] sm:$0xff]
    %v128 = vld [vmem:[#allocation5 + $0x160] sm:$0xff]
    %v129 = vld [vmem:[#allocation5 + $0x168] sm:$0xff]
    %v130 = vld [vmem:[#allocation5 + $0x170] sm:$0xff]
    %v131 = vld [vmem:[#allocation5 + $0x178] sm:$0xff]
    %v132 = vld [vmem:[#allocation5 + $0x180] sm:$0xff]
    %v133 = vld [vmem:[#allocation5 + $0x188] sm:$0xff]
    %v134 = vld [vmem:[#allocation5 + $0x190] sm:$0xff]
    %v135 = vld [vmem:[#allocation5 + $0x198] sm:$0xff]
    %v136 = vld [vmem:[#allocation5 + $0x1a0] sm:$0xff]
    %v137 = vld [vmem:[#allocation5 + $0x1a8] sm:$0xff]
    %v138 = vld [vmem:[#allocation5 + $0x1b0] sm:$0xff]
    %v139 = vld [vmem:[#allocation5 + $0x1b8] sm:$0xff]
    %v140 = vld [vmem:[#allocation5 + $0x1c0] sm:$0xff]
    %v141 = vld [vmem:[#allocation5 + $0x1c8] sm:$0xff]
    %v142 = vld [vmem:[#allocation5 + $0x1d0] sm:$0xff]
    %v143 = vld [vmem:[#allocation5 + $0x1d8] sm:$0xff]
    %v144 = vld [vmem:[#allocation5 + $0x1e0] sm:$0xff]
    %v145 = vld [vmem:[#allocation5 + $0x1e8] sm:$0xff]
    %v146 = vld [vmem:[#allocation5 + $0x1f0] sm:$0xff]
    %v147 = vld [vmem:[#allocation5 + $0x1f8] sm:$0xff]
    %v148 = vld [vmem:[#allocation5 + $0x200] sm:$0xff]
    %v149 = vld [vmem:[#allocation5 + $0x208] sm:$0xff]
    %v150 = vld [vmem:[#allocation5 + $0x210] sm:$0xff]
    %v151 = vld [vmem:[#allocation5 + $0x218] sm:$0xff]
    %v152 = vld [vmem:[#allocation5 + $0x220] sm:$0xff]
    %v153 = vld [vmem:[#allocation5 + $0x228] sm:$0xff]
    %v154 = vld [vmem:[#allocation5 + $0x230] sm:$0xff]
    %v155 = vld [vmem:[#allocation5 + $0x238] sm:$0xff]
    %v156 = vld [vmem:[#allocation5 + $0x240] sm:$0xff]
    %v157 = vld [vmem:[#allocation5 + $0x248] sm:$0xff]
    %v158 = vld [vmem:[#allocation5 + $0x250] sm:$0xff]
    %v159 = vld [vmem:[#allocation5 + $0x258] sm:$0xff]
    %v160 = vld [vmem:[#allocation5 + $0x260] sm:$0xff]
    %v161 = vld [vmem:[#allocation5 + $0x268] sm:$0xff]
    %v162 = vld [vmem:[#allocation5 + $0x270] sm:$0xff]
    %v163 = vld [vmem:[#allocation5 + $0x278] sm:$0xff]
    %v164 = vld [vmem:[#allocation5 + $0x280] sm:$0xff]
    %v165 = vld [vmem:[#allocation5 + $0x288] sm:$0xff]
    %v166 = vld [vmem:[#allocation5 + $0x290] sm:$0xff]
    %v167 = vld [vmem:[#allocation5 + $0x298] sm:$0xff]
    %v168 = vld [vmem:[#allocation5 + $0x2a0] sm:$0xff]
    %v169 = vld [vmem:[#allocation5 + $0x2a8] sm:$0xff]
    %v170 = vld [vmem:[#allocation5 + $0x2b0] sm:$0xff]
    %v171 = vld [vmem:[#allocation5 + $0x2b8] sm:$0xff]
    %v172 = vld [vmem:[#allocation5 + $0x2c0] sm:$0xff]
    %v173 = vld [vmem:[#allocation5 + $0x2c8] sm:$0xff]
    %v174 = vld [vmem:[#allocation5 + $0x2d0] sm:$0xff]
    %v175 = vld [vmem:[#allocation5 + $0x2d8] sm:$0xff]
    %v176 = vld [vmem:[#allocation5 + $0x2e0] sm:$0xff]
    %v177 = vld [vmem:[#allocation5 + $0x2e8] sm:$0xff]
    %v178 = vld [vmem:[#allocation5 + $0x2f0] sm:$0xff]
    %v179 = vld [vmem:[#allocation5 + $0x2f8] sm:$0xff]
    %v180 = vld [vmem:[#allocation5 + $0x300] sm:$0xff]
    %v181 = vld [vmem:[#allocation5 + $0x308] sm:$0xff]
    %v182 = vld [vmem:[#allocation5 + $0x310] sm:$0xff]
    %v183 = vld [vmem:[#allocation5 + $0x318] sm:$0xff]
    %v184 = vld [vmem:[#allocation5 + $0x320] sm:$0xff]
    %v185 = vld [vmem:[#allocation5 + $0x328] sm:$0xff]
    %v186 = vld [vmem:[#allocation5 + $0x330] sm:$0xff]
    %v187 = vld [vmem:[#allocation5 + $0x338] sm:$0xff]
    %v188 = vld [vmem:[#allocation5 + $0x340] sm:$0xff]
    %v189 = vld [vmem:[#allocation5 + $0x348] sm:$0xff]
    %v190 = vld [vmem:[#allocation5 + $0x350] sm:$0xff]
    %v191 = vld [vmem:[#allocation5 + $0x358] sm:$0xff]
    %v192 = vld [vmem:[#allocation5 + $0x360] sm:$0xff]
    %v193 = vld [vmem:[#allocation5 + $0x368] sm:$0xff]
    %v194 = vld [vmem:[#allocation5 + $0x370] sm:$0xff]
    %v195 = vld [vmem:[#allocation5 + $0x378] sm:$0xff]
    %v196 = vld [vmem:[#allocation5 + $0x380] sm:$0xff]
    %v197 = vld [vmem:[#allocation5 + $0x388] sm:$0xff]
    %v198 = vld [vmem:[#allocation5 + $0x390] sm:$0xff]
    %v199 = vld [vmem:[#allocation5 + $0x398] sm:$0xff]
    %v200 = vld [vmem:[#allocation5 + $0x3a0] sm:$0xff]
    %v201 = vld [vmem:[#allocation5 + $0x3a8] sm:$0xff]
    %v202 = vld [vmem:[#allocation5 + $0x3b0] sm:$0xff]
    %v203 = vld [vmem:[#allocation5 + $0x3b8] sm:$0xff]
    %v204 = vld [vmem:[#allocation5 + $0x3c0] sm:$0xff]
    %v205 = vld [vmem:[#allocation5 + $0x3c8] sm:$0xff]
    %v206 = vld [vmem:[#allocation5 + $0x3d0] sm:$0xff]
    %v207 = vld [vmem:[#allocation5 + $0x3d8] sm:$0xff]
    %v208 = vld [vmem:[#allocation5 + $0x3e0] sm:$0xff]
    %v209 = vld [vmem:[#allocation5 + $0x3e8] sm:$0xff]
    %v210 = vld [vmem:[#allocation5 + $0x3f0] sm:$0xff]
    %v211 = vld [vmem:[#allocation5 + $0x3f8] sm:$0xff]
    %v212 = vunpack.c.l.s8.bf16 %v84
    %v213 = vunpack.c.l.s8.bf16 %v85
    %v214 = vunpack.c.l.s8.bf16 %v86
    %v215 = vunpack.c.l.s8.bf16 %v87
    %v216 = vunpack.c.h.s8.bf16 %v84
    %v217 = vunpack.c.h.s8.bf16 %v85
    %v218 = vunpack.c.h.s8.bf16 %v86
    %v219 = vunpack.c.h.s8.bf16 %v87
    %v220 = vunpack.c.l.s8.bf16 %v88
    %v221 = vunpack.c.l.s8.bf16 %v89
    %v222 = vunpack.c.l.s8.bf16 %v90
    %v223 = vunpack.c.l.s8.bf16 %v91
    %v224 = vunpack.c.h.s8.bf16 %v88
    %v225 = vunpack.c.h.s8.bf16 %v89
    %v226 = vunpack.c.h.s8.bf16 %v90
    %v227 = vunpack.c.h.s8.bf16 %v91
    %v228 = vunpack.c.l.s8.bf16 %v92
    %v229 = vunpack.c.l.s8.bf16 %v93
    %v230 = vunpack.c.l.s8.bf16 %v94
    %v231 = vunpack.c.l.s8.bf16 %v95
    %v232 = vunpack.c.h.s8.bf16 %v92
    %v233 = vunpack.c.h.s8.bf16 %v93
    %v234 = vunpack.c.h.s8.bf16 %v94
    %v235 = vunpack.c.h.s8.bf16 %v95
    %v236 = vunpack.c.l.s8.bf16 %v96
    %v237 = vunpack.c.l.s8.bf16 %v97
    %v238 = vunpack.c.l.s8.bf16 %v98
    %v239 = vunpack.c.l.s8.bf16 %v99
    %v240 = vunpack.c.h.s8.bf16 %v96
    %v241 = vunpack.c.h.s8.bf16 %v97
    %v242 = vunpack.c.h.s8.bf16 %v98
    %v243 = vunpack.c.h.s8.bf16 %v99
    %v244 = vunpack.c.l.s8.bf16 %v100
    %v245 = vunpack.c.l.s8.bf16 %v101
    %v246 = vunpack.c.l.s8.bf16 %v102
    %v247 = vunpack.c.l.s8.bf16 %v103
    %v248 = vunpack.c.h.s8.bf16 %v100
    %v249 = vunpack.c.h.s8.bf16 %v101
    %v250 = vunpack.c.h.s8.bf16 %v102
    %v251 = vunpack.c.h.s8.bf16 %v103
    %v252 = vunpack.c.l.s8.bf16 %v104
    %v253 = vunpack.c.l.s8.bf16 %v105
    %v254 = vunpack.c.l.s8.bf16 %v106
    %v255 = vunpack.c.l.s8.bf16 %v107
    %v256 = vunpack.c.h.s8.bf16 %v104
    %v257 = vunpack.c.h.s8.bf16 %v105
    %v258 = vunpack.c.h.s8.bf16 %v106
    %v259 = vunpack.c.h.s8.bf16 %v107
    %v260 = vunpack.c.l.s8.bf16 %v108
    %v261 = vunpack.c.l.s8.bf16 %v109
    %v262 = vunpack.c.l.s8.bf16 %v110
    %v263 = vunpack.c.l.s8.bf16 %v111
    %v264 = vunpack.c.h.s8.bf16 %v108
    %v265 = vunpack.c.h.s8.bf16 %v109
    %v266 = vunpack.c.h.s8.bf16 %v110
    %v267 = vunpack.c.h.s8.bf16 %v111
    %v268 = vunpack.c.l.s8.bf16 %v112
    %v269 = vunpack.c.l.s8.bf16 %v113
    %v270 = vunpack.c.l.s8.bf16 %v114
    %v271 = vunpack.c.l.s8.bf16 %v115
    %v272 = vunpack.c.h.s8.bf16 %v112
    %v273 = vunpack.c.h.s8.bf16 %v113
    %v274 = vunpack.c.h.s8.bf16 %v114
    %v275 = vunpack.c.h.s8.bf16 %v115
    %v276 = vunpack.c.l.s8.bf16 %v116
    %v277 = vunpack.c.l.s8.bf16 %v117
    %v278 = vunpack.c.l.s8.bf16 %v118
    %v279 = vunpack.c.l.s8.bf16 %v119
    %v280 = vunpack.c.h.s8.bf16 %v116
    %v281 = vunpack.c.h.s8.bf16 %v117
    %v282 = vunpack.c.h.s8.bf16 %v118
    %v283 = vunpack.c.h.s8.bf16 %v119
    %v284 = vunpack.c.l.s8.bf16 %v120
    %v285 = vunpack.c.l.s8.bf16 %v121
    %v286 = vunpack.c.l.s8.bf16 %v122
    %v287 = vunpack.c.l.s8.bf16 %v123
    %v288 = vunpack.c.h.s8.bf16 %v120
    %v289 = vunpack.c.h.s8.bf16 %v121
    %v290 = vunpack.c.h.s8.bf16 %v122
    %v291 = vunpack.c.h.s8.bf16 %v123
    %v292 = vunpack.c.l.s8.bf16 %v124
    %v293 = vunpack.c.l.s8.bf16 %v125
    %v294 = vunpack.c.l.s8.bf16 %v126
    %v295 = vunpack.c.l.s8.bf16 %v127
    %v296 = vunpack.c.h.s8.bf16 %v124
    %v297 = vunpack.c.h.s8.bf16 %v125
    %v298 = vunpack.c.h.s8.bf16 %v126
    %v299 = vunpack.c.h.s8.bf16 %v127
    %v300 = vunpack.c.l.s8.bf16 %v128
    %v301 = vunpack.c.l.s8.bf16 %v129
    %v302 = vunpack.c.l.s8.bf16 %v130
    %v303 = vunpack.c.l.s8.bf16 %v131
    %v304 = vunpack.c.h.s8.bf16 %v128
    %v305 = vunpack.c.h.s8.bf16 %v129
    %v306 = vunpack.c.h.s8.bf16 %v130
    %v307 = vunpack.c.h.s8.bf16 %v131
    %v308 = vunpack.c.l.s8.bf16 %v132
    %v309 = vunpack.c.l.s8.bf16 %v133
    %v310 = vunpack.c.l.s8.bf16 %v134
    %v311 = vunpack.c.l.s8.bf16 %v135
    %v312 = vunpack.c.h.s8.bf16 %v132
    %v313 = vunpack.c.h.s8.bf16 %v133
    %v314 = vunpack.c.h.s8.bf16 %v134
    %v315 = vunpack.c.h.s8.bf16 %v135
    %v316 = vunpack.c.l.s8.bf16 %v136
    %v317 = vunpack.c.l.s8.bf16 %v137
    %v318 = vunpack.c.l.s8.bf16 %v138
    %v319 = vunpack.c.l.s8.bf16 %v139
    %v320 = vunpack.c.h.s8.bf16 %v136
    %v321 = vunpack.c.h.s8.bf16 %v137
    %v322 = vunpack.c.h.s8.bf16 %v138
    %v323 = vunpack.c.h.s8.bf16 %v139
    %v324 = vunpack.c.l.s8.bf16 %v140
    %v325 = vunpack.c.l.s8.bf16 %v141
    %v326 = vunpack.c.l.s8.bf16 %v142
    %v327 = vunpack.c.l.s8.bf16 %v143
    %v328 = vunpack.c.h.s8.bf16 %v140
    %v329 = vunpack.c.h.s8.bf16 %v141
    %v330 = vunpack.c.h.s8.bf16 %v142
    %v331 = vunpack.c.h.s8.bf16 %v143
    %v332 = vunpack.c.l.s8.bf16 %v144
    %v333 = vunpack.c.l.s8.bf16 %v145
    %v334 = vunpack.c.l.s8.bf16 %v146
    %v335 = vunpack.c.l.s8.bf16 %v147
    %v336 = vunpack.c.h.s8.bf16 %v144
    %v337 = vunpack.c.h.s8.bf16 %v145
    %v338 = vunpack.c.h.s8.bf16 %v146
    %v339 = vunpack.c.h.s8.bf16 %v147
    %v340 = vunpack.c.l.s8.bf16 %v148
    %v341 = vunpack.c.l.s8.bf16 %v149
    %v342 = vunpack.c.l.s8.bf16 %v150
    %v343 = vunpack.c.l.s8.bf16 %v151
    %v344 = vunpack.c.h.s8.bf16 %v148
    %v345 = vunpack.c.h.s8.bf16 %v149
    %v346 = vunpack.c.h.s8.bf16 %v150
    %v347 = vunpack.c.h.s8.bf16 %v151
    %v348 = vunpack.c.l.s8.bf16 %v152
    %v349 = vunpack.c.l.s8.bf16 %v153
    %v350 = vunpack.c.l.s8.bf16 %v154
    %v351 = vunpack.c.l.s8.bf16 %v155
    %v352 = vunpack.c.h.s8.bf16 %v152
    %v353 = vunpack.c.h.s8.bf16 %v153
    %v354 = vunpack.c.h.s8.bf16 %v154
    %v355 = vunpack.c.h.s8.bf16 %v155
    %v356 = vunpack.c.l.s8.bf16 %v156
    %v357 = vunpack.c.l.s8.bf16 %v157
    %v358 = vunpack.c.l.s8.bf16 %v158
    %v359 = vunpack.c.l.s8.bf16 %v159
    %v360 = vunpack.c.h.s8.bf16 %v156
    %v361 = vunpack.c.h.s8.bf16 %v157
    %v362 = vunpack.c.h.s8.bf16 %v158
    %v363 = vunpack.c.h.s8.bf16 %v159
    %v364 = vunpack.c.l.s8.bf16 %v160
    %v365 = vunpack.c.l.s8.bf16 %v161
    %v366 = vunpack.c.l.s8.bf16 %v162
    %v367 = vunpack.c.l.s8.bf16 %v163
    %v368 = vunpack.c.h.s8.bf16 %v160
    %v369 = vunpack.c.h.s8.bf16 %v161
    %v370 = vunpack.c.h.s8.bf16 %v162
    %v371 = vunpack.c.h.s8.bf16 %v163
    %v372 = vunpack.c.l.s8.bf16 %v164
    %v373 = vunpack.c.l.s8.bf16 %v165
    %v374 = vunpack.c.l.s8.bf16 %v166
    %v375 = vunpack.c.l.s8.bf16 %v167
    %v376 = vunpack.c.h.s8.bf16 %v164
    %v377 = vunpack.c.h.s8.bf16 %v165
    %v378 = vunpack.c.h.s8.bf16 %v166
    %v379 = vunpack.c.h.s8.bf16 %v167
    %v380 = vunpack.c.l.s8.bf16 %v168
    %v381 = vunpack.c.l.s8.bf16 %v169
    %v382 = vunpack.c.l.s8.bf16 %v170
    %v383 = vunpack.c.l.s8.bf16 %v171
    %v384 = vunpack.c.h.s8.bf16 %v168
    %v385 = vunpack.c.h.s8.bf16 %v169
    %v386 = vunpack.c.h.s8.bf16 %v170
    %v387 = vunpack.c.h.s8.bf16 %v171
    %v388 = vunpack.c.l.s8.bf16 %v172
    %v389 = vunpack.c.l.s8.bf16 %v173
    %v390 = vunpack.c.l.s8.bf16 %v174
    %v391 = vunpack.c.l.s8.bf16 %v175
    %v392 = vunpack.c.h.s8.bf16 %v172
    %v393 = vunpack.c.h.s8.bf16 %v173
    %v394 = vunpack.c.h.s8.bf16 %v174
    %v395 = vunpack.c.h.s8.bf16 %v175
    %v396 = vunpack.c.l.s8.bf16 %v176
    %v397 = vunpack.c.l.s8.bf16 %v177
    %v398 = vunpack.c.l.s8.bf16 %v178
    %v399 = vunpack.c.l.s8.bf16 %v179
    %v400 = vunpack.c.h.s8.bf16 %v176
    %v401 = vunpack.c.h.s8.bf16 %v177
    %v402 = vunpack.c.h.s8.bf16 %v178
    %v403 = vunpack.c.h.s8.bf16 %v179
    %v404 = vunpack.c.l.s8.bf16 %v180
    %v405 = vunpack.c.l.s8.bf16 %v181
    %v406 = vunpack.c.l.s8.bf16 %v182
    %v407 = vunpack.c.l.s8.bf16 %v183
    %v408 = vunpack.c.h.s8.bf16 %v180
    %v409 = vunpack.c.h.s8.bf16 %v181
    %v410 = vunpack.c.h.s8.bf16 %v182
    %v411 = vunpack.c.h.s8.bf16 %v183
    %v412 = vunpack.c.l.s8.bf16 %v184
    %v413 = vunpack.c.l.s8.bf16 %v185
    %v414 = vunpack.c.l.s8.bf16 %v186
    %v415 = vunpack.c.l.s8.bf16 %v187
    %v416 = vunpack.c.h.s8.bf16 %v184
    %v417 = vunpack.c.h.s8.bf16 %v185
    %v418 = vunpack.c.h.s8.bf16 %v186
    %v419 = vunpack.c.h.s8.bf16 %v187
    %v420 = vunpack.c.l.s8.bf16 %v188
    %v421 = vunpack.c.l.s8.bf16 %v189
    %v422 = vunpack.c.l.s8.bf16 %v190
    %v423 = vunpack.c.l.s8.bf16 %v191
    %v424 = vunpack.c.h.s8.bf16 %v188
    %v425 = vunpack.c.h.s8.bf16 %v189
    %v426 = vunpack.c.h.s8.bf16 %v190
    %v427 = vunpack.c.h.s8.bf16 %v191
    %v428 = vunpack.c.l.s8.bf16 %v192
    %v429 = vunpack.c.l.s8.bf16 %v193
    %v430 = vunpack.c.l.s8.bf16 %v194
    %v431 = vunpack.c.l.s8.bf16 %v195
    %v432 = vunpack.c.h.s8.bf16 %v192
    %v433 = vunpack.c.h.s8.bf16 %v193
    %v434 = vunpack.c.h.s8.bf16 %v194
    %v435 = vunpack.c.h.s8.bf16 %v195
    %v436 = vunpack.c.l.s8.bf16 %v196
    %v437 = vunpack.c.l.s8.bf16 %v197
    %v438 = vunpack.c.l.s8.bf16 %v198
    %v439 = vunpack.c.l.s8.bf16 %v199
    %v440 = vunpack.c.h.s8.bf16 %v196
    %v441 = vunpack.c.h.s8.bf16 %v197
    %v442 = vunpack.c.h.s8.bf16 %v198
    %v443 = vunpack.c.h.s8.bf16 %v199
    %v444 = vunpack.c.l.s8.bf16 %v200
    %v445 = vunpack.c.l.s8.bf16 %v201
    %v446 = vunpack.c.l.s8.bf16 %v202
    %v447 = vunpack.c.l.s8.bf16 %v203
    %v448 = vunpack.c.h.s8.bf16 %v200
    %v449 = vunpack.c.h.s8.bf16 %v201
    %v450 = vunpack.c.h.s8.bf16 %v202
    %v451 = vunpack.c.h.s8.bf16 %v203
    %v452 = vunpack.c.l.s8.bf16 %v204
    %v453 = vunpack.c.l.s8.bf16 %v205
    %v454 = vunpack.c.l.s8.bf16 %v206
    %v455 = vunpack.c.l.s8.bf16 %v207
    %v456 = vunpack.c.h.s8.bf16 %v204
    %v457 = vunpack.c.h.s8.bf16 %v205
    %v458 = vunpack.c.h.s8.bf16 %v206
    %v459 = vunpack.c.h.s8.bf16 %v207
    %v460 = vunpack.c.l.s8.bf16 %v208
    %v461 = vunpack.c.l.s8.bf16 %v209
    %v462 = vunpack.c.l.s8.bf16 %v210
    %v463 = vunpack.c.l.s8.bf16 %v211
    %v464 = vunpack.c.h.s8.bf16 %v208
    %v465 = vunpack.c.h.s8.bf16 %v209
    %v466 = vunpack.c.h.s8.bf16 %v210
    %v467 = vunpack.c.h.s8.bf16 %v211
    %v476 = vunpack.c.l.b16 %v76
    %v477 = vunpack.c.h.b16 %v76
    %v478 = vunpack.c.l.b16 %v77
    %v479 = vunpack.c.h.b16 %v77
    %v480 = vunpack.c.l.b16 %v78
    %v481 = vunpack.c.h.b16 %v78
    %v482 = vunpack.c.l.b16 %v79
    %v483 = vunpack.c.h.b16 %v79
    %v484 = vunpack.c.l.b16 %v80
    %v485 = vunpack.c.h.b16 %v80
    %v486 = vunpack.c.l.b16 %v81
    %v487 = vunpack.c.h.b16 %v81
    %v488 = vunpack.c.l.b16 %v82
    %v489 = vunpack.c.h.b16 %v82
    %v490 = vunpack.c.l.b16 %v83
    %v491 = vunpack.c.h.b16 %v83
    %v492 = vpack.c.b16 %v484, %v476
    %v493 = vpack.c.b16 %v485, %v477
    %v494 = vpack.c.b16 %v486, %v478
    %v495 = vpack.c.b16 %v487, %v479
    %v496 = vpack.c.b16 %v488, %v480
    %v497 = vpack.c.b16 %v489, %v481
    %v498 = vpack.c.b16 %v490, %v482
    %v499 = vpack.c.b16 %v491, %v483
    %508 = vmatprep.subr.bf16.mxu0 %v213
    %509 = vmatpush1.bf16.msra.mxu0 %v212
    %510 = vmatprep.subr.bf16.mxu0 %v217
    %511 = vmatpush1.bf16.msra.mxu0 %v216
    %512 = vmatprep.subr.bf16.mxu0 %v221
    %513 = vmatpush1.bf16.msra.mxu0 %v220
    %514 = vmatprep.subr.bf16.mxu0 %v225
    %515 = vmatpush1.bf16.msra.mxu0 %v224
    %516 = vmatprep.subr.bf16.mxu0 %v229
    %517 = vmatpush1.bf16.msra.mxu0 %v228
    %518 = vmatprep.subr.bf16.mxu0 %v233
    %519 = vmatpush1.bf16.msra.mxu0 %v232
    %520 = vmatprep.subr.bf16.mxu0 %v237
    %521 = vmatpush1.bf16.msra.mxu0 %v236
    %522 = vmatprep.subr.bf16.mxu0 %v241
    %523 = vmatpush1.bf16.msra.mxu0 %v240
    %524 = vmatprep.subr.bf16.mxu0 %v245
    %525 = vmatpush1.bf16.msra.mxu0 %v244
    %526 = vmatprep.subr.bf16.mxu0 %v249
    %527 = vmatpush1.bf16.msra.mxu0 %v248
    %528 = vmatprep.subr.bf16.mxu0 %v253
    %529 = vmatpush1.bf16.msra.mxu0 %v252
    %530 = vmatprep.subr.bf16.mxu0 %v257
    %531 = vmatpush1.bf16.msra.mxu0 %v256
    %532 = vmatprep.subr.bf16.mxu0 %v261
    %533 = vmatpush1.bf16.msra.mxu0 %v260
    %534 = vmatprep.subr.bf16.mxu0 %v265
    %535 = vmatpush1.bf16.msra.mxu0 %v264
    %536 = vmatprep.subr.bf16.mxu0 %v269
    %537 = vmatpush1.bf16.msra.mxu0 %v268
    %538 = vmatprep.subr.bf16.mxu0 %v273
    %539 = vmatpush1.bf16.msra.mxu0 %v272
    %540 = vmatprep.mubr.bf16.mxu0 %v493
    %541 = vmatmul.mubr.bf16.gmra.mrb[0].mxu0 %v492
    %v542 = vpop.f32.mrb[0].mxu0
    %v543 = vadd.f32 0.0, %v542
    %v544 = vpop.f32.mrb[0].mxu0
    %v545 = vadd.f32 0.0, %v544
    %v546 = vpop.f32.mrb[0].mxu0
    %v547 = vadd.f32 0.0, %v546
    %v548 = vpop.f32.mrb[0].mxu0
    %v549 = vadd.f32 0.0, %v548
    %550 = vdwg.mxu0
    %551 = vmatprep.subr.bf16.mxu0 %v277
    %552 = vmatpush1.bf16.msra.mxu0 %v276
    %553 = vmatprep.subr.bf16.mxu0 %v281
    %554 = vmatpush1.bf16.msra.mxu0 %v280
    %555 = vmatprep.subr.bf16.mxu0 %v285
    %556 = vmatpush1.bf16.msra.mxu0 %v284
    %557 = vmatprep.subr.bf16.mxu0 %v289
    %558 = vmatpush1.bf16.msra.mxu0 %v288
    %559 = vmatprep.subr.bf16.mxu0 %v293
    %560 = vmatpush1.bf16.msra.mxu0 %v292
    %561 = vmatprep.subr.bf16.mxu0 %v297
    %562 = vmatpush1.bf16.msra.mxu0 %v296
    %563 = vmatprep.subr.bf16.mxu0 %v301
    %564 = vmatpush1.bf16.msra.mxu0 %v300
    %565 = vmatprep.subr.bf16.mxu0 %v305
    %566 = vmatpush1.bf16.msra.mxu0 %v304
    %567 = vmatprep.subr.bf16.mxu0 %v309
    %568 = vmatpush1.bf16.msra.mxu0 %v308
    %569 = vmatprep.subr.bf16.mxu0 %v313
    %570 = vmatpush1.bf16.msra.mxu0 %v312
    %571 = vmatprep.subr.bf16.mxu0 %v317
    %572 = vmatpush1.bf16.msra.mxu0 %v316
    %573 = vmatprep.subr.bf16.mxu0 %v321
    %574 = vmatpush1.bf16.msra.mxu0 %v320
    %575 = vmatprep.subr.bf16.mxu0 %v325
    %576 = vmatpush1.bf16.msra.mxu0 %v324
    %577 = vmatprep.subr.bf16.mxu0 %v329
    %578 = vmatpush1.bf16.msra.mxu0 %v328
    %579 = vmatprep.subr.bf16.mxu0 %v333
    %580 = vmatpush1.bf16.msra.mxu0 %v332
    %581 = vmatprep.subr.bf16.mxu0 %v337
    %582 = vmatpush1.bf16.msra.mxu0 %v336
    %583 = vmatprep.mubr.bf16.mxu0 %v495
    %584 = vmatmul.mubr.bf16.gmra.mrb[0].mxu0 %v494
    %v585 = vpop.f32.mrb[0].mxu0
    %v586 = vadd.f32 %v543, %v585
    %v587 = vpop.f32.mrb[0].mxu0
    %v588 = vadd.f32 %v545, %v587
    %v589 = vpop.f32.mrb[0].mxu0
    %v590 = vadd.f32 %v547, %v589
    %v591 = vpop.f32.mrb[0].mxu0
    %v592 = vadd.f32 %v549, %v591
    %593 = vdwg.mxu0
    %594 = vmatprep.subr.bf16.mxu0 %v341
    %595 = vmatpush1.bf16.msra.mxu0 %v340
    %596 = vmatprep.subr.bf16.mxu0 %v345
    %597 = vmatpush1.bf16.msra.mxu0 %v344
    %598 = vmatprep.subr.bf16.mxu0 %v349
    %599 = vmatpush1.bf16.msra.mxu0 %v348
    %600 = vmatprep.subr.bf16.mxu0 %v353
    %601 = vmatpush1.bf16.msra.mxu0 %v352
    %602 = vmatprep.subr.bf16.mxu0 %v357
    %603 = vmatpush1.bf16.msra.mxu0 %v356
    %604 = vmatprep.subr.bf16.mxu0 %v361
    %605 = vmatpush1.bf16.msra.mxu0 %v360
    %606 = vmatprep.subr.bf16.mxu0 %v365
    %607 = vmatpush1.bf16.msra.mxu0 %v364
    %608 = vmatprep.subr.bf16.mxu0 %v369
    %609 = vmatpush1.bf16.msra.mxu0 %v368
    %610 = vmatprep.subr.bf16.mxu0 %v373
    %611 = vmatpush1.bf16.msra.mxu0 %v372
    %612 = vmatprep.subr.bf16.mxu0 %v377
    %613 = vmatpush1.bf16.msra.mxu0 %v376
    %614 = vmatprep.subr.bf16.mxu0 %v381
    %615 = vmatpush1.bf16.msra.mxu0 %v380
    %616 = vmatprep.subr.bf16.mxu0 %v385
    %617 = vmatpush1.bf16.msra.mxu0 %v384
    %618 = vmatprep.subr.bf16.mxu0 %v389
    %619 = vmatpush1.bf16.msra.mxu0 %v388
    %620 = vmatprep.subr.bf16.mxu0 %v393
    %621 = vmatpush1.bf16.msra.mxu0 %v392
    %622 = vmatprep.subr.bf16.mxu0 %v397
    %623 = vmatpush1.bf16.msra.mxu0 %v396
    %624 = vmatprep.subr.bf16.mxu0 %v401
    %625 = vmatpush1.bf16.msra.mxu0 %v400
    %626 = vmatprep.mubr.bf16.mxu0 %v497
    %627 = vmatmul.mubr.bf16.gmra.mrb[0].mxu0 %v496
    %v628 = vpop.f32.mrb[0].mxu0
    %v629 = vadd.f32 %v586, %v628
    %v630 = vpop.f32.mrb[0].mxu0
    %v631 = vadd.f32 %v588, %v630
    %v632 = vpop.f32.mrb[0].mxu0
    %v633 = vadd.f32 %v590, %v632
    %v634 = vpop.f32.mrb[0].mxu0
    %v635 = vadd.f32 %v592, %v634
    %636 = vdwg.mxu0
    %637 = vmatprep.subr.bf16.mxu0 %v405
    %638 = vmatpush1.bf16.msra.mxu0 %v404
    %639 = vmatprep.subr.bf16.mxu0 %v409
    %640 = vmatpush1.bf16.msra.mxu0 %v408
    %641 = vmatprep.subr.bf16.mxu0 %v413
    %642 = vmatpush1.bf16.msra.mxu0 %v412
    %643 = vmatprep.subr.bf16.mxu0 %v417
    %644 = vmatpush1.bf16.msra.mxu0 %v416
    %645 = vmatprep.subr.bf16.mxu0 %v421
    %646 = vmatpush1.bf16.msra.mxu0 %v420
    %647 = vmatprep.subr.bf16.mxu0 %v425
    %648 = vmatpush1.bf16.msra.mxu0 %v424
    %649 = vmatprep.subr.bf16.mxu0 %v429
    %650 = vmatpush1.bf16.msra.mxu0 %v428
    %651 = vmatprep.subr.bf16.mxu0 %v433
    %652 = vmatpush1.bf16.msra.mxu0 %v432
    %653 = vmatprep.subr.bf16.mxu0 %v437
    %654 = vmatpush1.bf16.msra.mxu0 %v436
    %655 = vmatprep.subr.bf16.mxu0 %v441
    %656 = vmatpush1.bf16.msra.mxu0 %v440
    %657 = vmatprep.subr.bf16.mxu0 %v445
    %658 = vmatpush1.bf16.msra.mxu0 %v444
    %659 = vmatprep.subr.bf16.mxu0 %v449
    %660 = vmatpush1.bf16.msra.mxu0 %v448
    %661 = vmatprep.subr.bf16.mxu0 %v453
    %662 = vmatpush1.bf16.msra.mxu0 %v452
    %663 = vmatprep.subr.bf16.mxu0 %v457
    %664 = vmatpush1.bf16.msra.mxu0 %v456
    %665 = vmatprep.subr.bf16.mxu0 %v461
    %666 = vmatpush1.bf16.msra.mxu0 %v460
    %667 = vmatprep.subr.bf16.mxu0 %v465
    %668 = vmatpush1.bf16.msra.mxu0 %v464
    %669 = vmatprep.mubr.bf16.mxu0 %v499
    %670 = vmatmul.mubr.bf16.gmra.mrb[0].mxu0 %v498
    %v671 = vpop.f32.mrb[0].mxu0
    %v672 = vadd.f32 %v629, %v671
    %v673 = vpop.f32.mrb[0].mxu0
    %v674 = vadd.f32 %v631, %v673
    %v675 = vpop.f32.mrb[0].mxu0
    %v676 = vadd.f32 %v633, %v675
    %v677 = vpop.f32.mrb[0].mxu0
    %v678 = vadd.f32 %v635, %v677
    %679 = vdwg.mxu0
    %680 = vmatprep.subr.bf16.mxu0 %v215
    %681 = vmatpush1.bf16.msra.mxu0 %v214
    %682 = vmatprep.subr.bf16.mxu0 %v219
    %683 = vmatpush1.bf16.msra.mxu0 %v218
    %684 = vmatprep.subr.bf16.mxu0 %v223
    %685 = vmatpush1.bf16.msra.mxu0 %v222
    %686 = vmatprep.subr.bf16.mxu0 %v227
    %687 = vmatpush1.bf16.msra.mxu0 %v226
    %688 = vmatprep.subr.bf16.mxu0 %v231
    %689 = vmatpush1.bf16.msra.mxu0 %v230
    %690 = vmatprep.subr.bf16.mxu0 %v235
    %691 = vmatpush1.bf16.msra.mxu0 %v234
    %692 = vmatprep.subr.bf16.mxu0 %v239
    %693 = vmatpush1.bf16.msra.mxu0 %v238
    %694 = vmatprep.subr.bf16.mxu0 %v243
    %695 = vmatpush1.bf16.msra.mxu0 %v242
    %696 = vmatprep.subr.bf16.mxu0 %v247
    %697 = vmatpush1.bf16.msra.mxu0 %v246
    %698 = vmatprep.subr.bf16.mxu0 %v251
    %699 = vmatpush1.bf16.msra.mxu0 %v250
    %700 = vmatprep.subr.bf16.mxu0 %v255
    %701 = vmatpush1.bf16.msra.mxu0 %v254
    %702 = vmatprep.subr.bf16.mxu0 %v259
    %703 = vmatpush1.bf16.msra.mxu0 %v258
    %704 = vmatprep.subr.bf16.mxu0 %v263
    %705 = vmatpush1.bf16.msra.mxu0 %v262
    %706 = vmatprep.subr.bf16.mxu0 %v267
    %707 = vmatpush1.bf16.msra.mxu0 %v266
    %708 = vmatprep.subr.bf16.mxu0 %v271
    %709 = vmatpush1.bf16.msra.mxu0 %v270
    %710 = vmatprep.subr.bf16.mxu0 %v275
    %711 = vmatpush1.bf16.msra.mxu0 %v274
    %712 = vmatprep.mubr.bf16.mxu0 %v493
    %713 = vmatmul.mubr.bf16.gmra.mrb[0].mxu0 %v492
    %v714 = vpop.f32.mrb[0].mxu0
    %v715 = vadd.f32 0.0, %v714
    %v716 = vpop.f32.mrb[0].mxu0
    %v717 = vadd.f32 0.0, %v716
    %v718 = vpop.f32.mrb[0].mxu0
    %v719 = vadd.f32 0.0, %v718
    %v720 = vpop.f32.mrb[0].mxu0
    %v721 = vadd.f32 0.0, %v720
    %722 = vdwg.mxu0
    %723 = vmatprep.subr.bf16.mxu0 %v279
    %724 = vmatpush1.bf16.msra.mxu0 %v278
    %725 = vmatprep.subr.bf16.mxu0 %v283
    %726 = vmatpush1.bf16.msra.mxu0 %v282
    %727 = vmatprep.subr.bf16.mxu0 %v287
    %728 = vmatpush1.bf16.msra.mxu0 %v286
    %729 = vmatprep.subr.bf16.mxu0 %v291
    %730 = vmatpush1.bf16.msra.mxu0 %v290
    %731 = vmatprep.subr.bf16.mxu0 %v295
    %732 = vmatpush1.bf16.msra.mxu0 %v294
    %733 = vmatprep.subr.bf16.mxu0 %v299
    %734 = vmatpush1.bf16.msra.mxu0 %v298
    %735 = vmatprep.subr.bf16.mxu0 %v303
    %736 = vmatpush1.bf16.msra.mxu0 %v302
    %737 = vmatprep.subr.bf16.mxu0 %v307
    %738 = vmatpush1.bf16.msra.mxu0 %v306
    %739 = vmatprep.subr.bf16.mxu0 %v311
    %740 = vmatpush1.bf16.msra.mxu0 %v310
    %741 = vmatprep.subr.bf16.mxu0 %v315
    %742 = vmatpush1.bf16.msra.mxu0 %v314
    %743 = vmatprep.subr.bf16.mxu0 %v319
    %744 = vmatpush1.bf16.msra.mxu0 %v318
    %745 = vmatprep.subr.bf16.mxu0 %v323
    %746 = vmatpush1.bf16.msra.mxu0 %v322
    %747 = vmatprep.subr.bf16.mxu0 %v327
    %748 = vmatpush1.bf16.msra.mxu0 %v326
    %749 = vmatprep.subr.bf16.mxu0 %v331
    %750 = vmatpush1.bf16.msra.mxu0 %v330
    %751 = vmatprep.subr.bf16.mxu0 %v335
    %752 = vmatpush1.bf16.msra.mxu0 %v334
    %753 = vmatprep.subr.bf16.mxu0 %v339
    %754 = vmatpush1.bf16.msra.mxu0 %v338
    %755 = vmatprep.mubr.bf16.mxu0 %v495
    %756 = vmatmul.mubr.bf16.gmra.mrb[0].mxu0 %v494
    %v757 = vpop.f32.mrb[0].mxu0
    %v758 = vadd.f32 %v715, %v757
    %v759 = vpop.f32.mrb[0].mxu0
    %v760 = vadd.f32 %v717, %v759
    %v761 = vpop.f32.mrb[0].mxu0
    %v762 = vadd.f32 %v719, %v761
    %v763 = vpop.f32.mrb[0].mxu0
    %v764 = vadd.f32 %v721, %v763
    %765 = vdwg.mxu0
    %766 = vmatprep.subr.bf16.mxu0 %v343
    %767 = vmatpush1.bf16.msra.mxu0 %v342
    %768 = vmatprep.subr.bf16.mxu0 %v347
    %769 = vmatpush1.bf16.msra.mxu0 %v346
    %770 = vmatprep.subr.bf16.mxu0 %v351
    %771 = vmatpush1.bf16.msra.mxu0 %v350
    %772 = vmatprep.subr.bf16.mxu0 %v355
    %773 = vmatpush1.bf16.msra.mxu0 %v354
    %774 = vmatprep.subr.bf16.mxu0 %v359
    %775 = vmatpush1.bf16.msra.mxu0 %v358
    %776 = vmatprep.subr.bf16.mxu0 %v363
    %777 = vmatpush1.bf16.msra.mxu0 %v362
    %778 = vmatprep.subr.bf16.mxu0 %v367
    %779 = vmatpush1.bf16.msra.mxu0 %v366
    %780 = vmatprep.subr.bf16.mxu0 %v371
    %781 = vmatpush1.bf16.msra.mxu0 %v370
    %782 = vmatprep.subr.bf16.mxu0 %v375
    %783 = vmatpush1.bf16.msra.mxu0 %v374
    %784 = vmatprep.subr.bf16.mxu0 %v379
    %785 = vmatpush1.bf16.msra.mxu0 %v378
    %786 = vmatprep.subr.bf16.mxu0 %v383
    %787 = vmatpush1.bf16.msra.mxu0 %v382
    %788 = vmatprep.subr.bf16.mxu0 %v387
    %789 = vmatpush1.bf16.msra.mxu0 %v386
    %790 = vmatprep.subr.bf16.mxu0 %v391
    %791 = vmatpush1.bf16.msra.mxu0 %v390
    %792 = vmatprep.subr.bf16.mxu0 %v395
    %793 = vmatpush1.bf16.msra.mxu0 %v394
    %794 = vmatprep.subr.bf16.mxu0 %v399
    %795 = vmatpush1.bf16.msra.mxu0 %v398
    %796 = vmatprep.subr.bf16.mxu0 %v403
    %797 = vmatpush1.bf16.msra.mxu0 %v402
    %798 = vmatprep.mubr.bf16.mxu0 %v497
    %799 = vmatmul.mubr.bf16.gmra.mrb[0].mxu0 %v496
    %v800 = vpop.f32.mrb[0].mxu0
    %v801 = vadd.f32 %v758, %v800
    %v802 = vpop.f32.mrb[0].mxu0
    %v803 = vadd.f32 %v760, %v802
    %v804 = vpop.f32.mrb[0].mxu0
    %v805 = vadd.f32 %v762, %v804
    %v806 = vpop.f32.mrb[0].mxu0
    %v807 = vadd.f32 %v764, %v806
    %808 = vdwg.mxu0
    %809 = vmatprep.subr.bf16.mxu0 %v407
    %810 = vmatpush1.bf16.msra.mxu0 %v406
    %811 = vmatprep.subr.bf16.mxu0 %v411
    %812 = vmatpush1.bf16.msra.mxu0 %v410
    %813 = vmatprep.subr.bf16.mxu0 %v415
    %814 = vmatpush1.bf16.msra.mxu0 %v414
    %815 = vmatprep.subr.bf16.mxu0 %v419
    %816 = vmatpush1.bf16.msra.mxu0 %v418
    %817 = vmatprep.subr.bf16.mxu0 %v423
    %818 = vmatpush1.bf16.msra.mxu0 %v422
    %819 = vmatprep.subr.bf16.mxu0 %v427
    %820 = vmatpush1.bf16.msra.mxu0 %v426
    %821 = vmatprep.subr.bf16.mxu0 %v431
    %822 = vmatpush1.bf16.msra.mxu0 %v430
    %823 = vmatprep.subr.bf16.mxu0 %v435
    %824 = vmatpush1.bf16.msra.mxu0 %v434
    %825 = vmatprep.subr.bf16.mxu0 %v439
    %826 = vmatpush1.bf16.msra.mxu0 %v438
    %827 = vmatprep.subr.bf16.mxu0 %v443
    %828 = vmatpush1.bf16.msra.mxu0 %v442
    %829 = vmatprep.subr.bf16.mxu0 %v447
    %830 = vmatpush1.bf16.msra.mxu0 %v446
    %831 = vmatprep.subr.bf16.mxu0 %v451
    %832 = vmatpush1.bf16.msra.mxu0 %v450
    %833 = vmatprep.subr.bf16.mxu0 %v455
    %834 = vmatpush1.bf16.msra.mxu0 %v454
    %835 = vmatprep.subr.bf16.mxu0 %v459
    %836 = vmatpush1.bf16.msra.mxu0 %v458
    %837 = vmatprep.subr.bf16.mxu0 %v463
    %838 = vmatpush1.bf16.msra.mxu0 %v462
    %839 = vmatprep.subr.bf16.mxu0 %v467
    %840 = vmatpush1.bf16.msra.mxu0 %v466
    %841 = vmatprep.mubr.bf16.mxu0 %v499
    %842 = vmatmul.mubr.bf16.gmra.mrb[0].mxu0 %v498
    %v843 = vpop.f32.mrb[0].mxu0
    %v844 = vadd.f32 %v801, %v843
    %v845 = vpop.f32.mrb[0].mxu0
    %v846 = vadd.f32 %v803, %v845
    %v847 = vpop.f32.mrb[0].mxu0
    %v848 = vadd.f32 %v805, %v847
    %v849 = vpop.f32.mrb[0].mxu0
    %v850 = vadd.f32 %v807, %v849
    %851 = vdwg.mxu0
    %v852 = vadd.f32 %v672, %v676
    %v853 = vrot.slane %v852, 4
    %v854 = vadd.f32 %v852, %v853
    %v855 = vrot.slane %v854, 2
    %v856 = vadd.f32 %v854, %v855
    %v857 = vrot.slane %v856, 1
    %v858 = vadd.f32 %v856, %v857
    %v859 = vadd.f32 %v674, %v678
    %v860 = vrot.slane %v859, 4
    %v861 = vadd.f32 %v859, %v860
    %v862 = vrot.slane %v861, 2
    %v863 = vadd.f32 %v861, %v862
    %v864 = vrot.slane %v863, 1
    %v865 = vadd.f32 %v863, %v864
    %v866 = vadd.f32 %v844, %v848
    %v867 = vrot.slane %v866, 4
    %v868 = vadd.f32 %v866, %v867
    %v869 = vrot.slane %v868, 2
    %v870 = vadd.f32 %v868, %v869
    %v871 = vrot.slane %v870, 1
    %v872 = vadd.f32 %v870, %v871
    %v873 = vadd.f32 %v846, %v850
    %v874 = vrot.slane %v873, 4
    %v875 = vadd.f32 %v873, %v874
    %v876 = vrot.slane %v875, 2
    %v877 = vadd.f32 %v875, %v876
    %v878 = vrot.slane %v877, 1
    %v879 = vadd.f32 %v877, %v878
    %v880 = vrcp.pop 16.0
    %v881 = vmul.f32 %v858, %v880
    %v882 = vmul.f32 %v865, %v880
    %v883 = vmul.f32 %v872, %v880
    %v884 = vmul.f32 %v879, %v880
    %v885 = vmul.f32 %v672, %v672
    %v886 = vmul.f32 %v674, %v674
    %v887 = vmul.f32 %v844, %v844
    %v888 = vmul.f32 %v846, %v846
    %v889 = vmul.f32 %v676, %v676
    %v890 = vmul.f32 %v678, %v678
    %v891 = vmul.f32 %v848, %v848
    %v892 = vmul.f32 %v850, %v850
    %v893 = vadd.f32 %v885, %v889
    %v894 = vrot.slane %v893, 4
    %v895 = vadd.f32 %v893, %v894
    %v896 = vrot.slane %v895, 2
    %v897 = vadd.f32 %v895, %v896
    %v898 = vrot.slane %v897, 1
    %v899 = vadd.f32 %v897, %v898
    %v900 = vadd.f32 %v886, %v890
    %v901 = vrot.slane %v900, 4
    %v902 = vadd.f32 %v900, %v901
    %v903 = vrot.slane %v902, 2
    %v904 = vadd.f32 %v902, %v903
    %v905 = vrot.slane %v904, 1
    %v906 = vadd.f32 %v904, %v905
    %v907 = vadd.f32 %v887, %v891
    %v908 = vrot.slane %v907, 4
    %v909 = vadd.f32 %v907, %v908
    %v910 = vrot.slane %v909, 2
    %v911 = vadd.f32 %v909, %v910
    %v912 = vrot.slane %v911, 1
    %v913 = vadd.f32 %v911, %v912
    %v914 = vadd.f32 %v888, %v892
    %v915 = vrot.slane %v914, 4
    %v916 = vadd.f32 %v914, %v915
    %v917 = vrot.slane %v916, 2
    %v918 = vadd.f32 %v916, %v917
    %v919 = vrot.slane %v918, 1
    %v920 = vadd.f32 %v918, %v919
    %v921 = vmul.f32 %v899, %v880
    %v922 = vmul.f32 %v906, %v880
    %v923 = vmul.f32 %v913, %v880
    %v924 = vmul.f32 %v920, %v880
    %v925 = vmul.f32 %v881, %v881
    %v926 = vmul.f32 %v882, %v882
    %v927 = vmul.f32 %v883, %v883
    %v928 = vmul.f32 %v884, %v884
    %v929 = vsub.f32 %v921, %v925
    %v930 = vsub.f32 %v922, %v926
    %v931 = vsub.f32 %v923, %v927
    %v932 = vsub.f32 %v924, %v928
    %v933 = vmax.f32 %v929, 0.0
    %v934 = vmax.f32 %v930, 0.0
    %v935 = vmax.f32 %v931, 0.0
    %v936 = vmax.f32 %v932, 0.0
    %v937 = vsub.f32 %v672, %v881
    %v938 = vsub.f32 %v674, %v882
    %v939 = vsub.f32 %v844, %v883
    %v940 = vsub.f32 %v846, %v884
    %v941 = vsub.f32 %v676, %v881
    %v942 = vsub.f32 %v678, %v882
    %v943 = vsub.f32 %v848, %v883
    %v944 = vsub.f32 %v850, %v884
    %v945 = vadd.f32 %v933, 1e-05
    %v946 = vadd.f32 %v934, 1e-05
    %v947 = vadd.f32 %v935, 1e-05
    %v948 = vadd.f32 %v936, 1e-05
    %v949 = vrsqrt.pop %v945
    %v950 = vrsqrt.pop %v946
    %v951 = vrsqrt.pop %v947
    %v952 = vrsqrt.pop %v948
    %v953 = vmul.f32 %v937, %v949
    %v954 = vmul.f32 %v938, %v950
    %v955 = vmul.f32 %v939, %v951
    %v956 = vmul.f32 %v940, %v952
    %v957 = vmul.f32 %v941, %v949
    %v958 = vmul.f32 %v942, %v950
    %v959 = vmul.f32 %v943, %v951
    %v960 = vmul.f32 %v944, %v952
    %v961 = vmax.f32 %v953, 0.0
    %v962 = vmax.f32 %v954, 0.0
    %v963 = vmax.f32 %v955, 0.0
    %v964 = vmax.f32 %v956, 0.0
    %v965 = vmax.f32 %v957, 0.0
    %v966 = vmax.f32 %v958, 0.0
    %v967 = vmax.f32 %v959, 0.0
    %v968 = vmax.f32 %v960, 0.0
    %v969 = vpack.c.bf16 %v965, %v961
    %v970 = vpack.c.bf16 %v966, %v962
    %v971 = vpack.c.bf16 %v967, %v963
    %v972 = vpack.c.bf16 %v968, %v964
    %v973 = vld [vmem:[#allocation7] sm:$0xff]
    %v974 = vld [vmem:[#allocation7 + $0x8] sm:$0xff]
    %v975 = vld [vmem:[#allocation7 + $0x10] sm:$0xff]
    %v976 = vld [vmem:[#allocation7 + $0x18] sm:$0xff]
    %v977 = vld [vmem:[#allocation7 + $0x20] sm:$0xff]
    %v978 = vld [vmem:[#allocation7 + $0x28] sm:$0xff]
    %v979 = vld [vmem:[#allocation7 + $0x30] sm:$0xff]
    %v980 = vld [vmem:[#allocation7 + $0x38] sm:$0xff]
    %v981 = vld [vmem:[#allocation7 + $0x40] sm:$0xff]
    %v982 = vld [vmem:[#allocation7 + $0x48] sm:$0xff]
    %v983 = vld [vmem:[#allocation7 + $0x50] sm:$0xff]
    %v984 = vld [vmem:[#allocation7 + $0x58] sm:$0xff]
    %v985 = vld [vmem:[#allocation7 + $0x60] sm:$0xff]
    %v986 = vld [vmem:[#allocation7 + $0x68] sm:$0xff]
    %v987 = vld [vmem:[#allocation7 + $0x70] sm:$0xff]
    %v988 = vld [vmem:[#allocation7 + $0x78] sm:$0xff]
    %v989 = vld [vmem:[#allocation7 + $0x80] sm:$0xff]
    %v990 = vld [vmem:[#allocation7 + $0x88] sm:$0xff]
    %v991 = vld [vmem:[#allocation7 + $0x90] sm:$0xff]
    %v992 = vld [vmem:[#allocation7 + $0x98] sm:$0xff]
    %v993 = vld [vmem:[#allocation7 + $0xa0] sm:$0xff]
    %v994 = vld [vmem:[#allocation7 + $0xa8] sm:$0xff]
    %v995 = vld [vmem:[#allocation7 + $0xb0] sm:$0xff]
    %v996 = vld [vmem:[#allocation7 + $0xb8] sm:$0xff]
    %v997 = vld [vmem:[#allocation7 + $0xc0] sm:$0xff]
    %v998 = vld [vmem:[#allocation7 + $0xc8] sm:$0xff]
    %v999 = vld [vmem:[#allocation7 + $0xd0] sm:$0xff]
    %v1000 = vld [vmem:[#allocation7 + $0xd8] sm:$0xff]
    %v1001 = vld [vmem:[#allocation7 + $0xe0] sm:$0xff]
    %v1002 = vld [vmem:[#allocation7 + $0xe8] sm:$0xff]
    %v1003 = vld [vmem:[#allocation7 + $0xf0] sm:$0xff]
    %v1004 = vld [vmem:[#allocation7 + $0xf8] sm:$0xff]
    %v1005 = vunpack.c.l.s8.bf16 %v973
    %v1006 = vunpack.c.l.s8.bf16 %v974
    %v1007 = vunpack.c.h.s8.bf16 %v973
    %v1008 = vunpack.c.h.s8.bf16 %v974
    %v1009 = vunpack.c.l.s8.bf16 %v975
    %v1010 = vunpack.c.l.s8.bf16 %v976
    %v1011 = vunpack.c.h.s8.bf16 %v975
    %v1012 = vunpack.c.h.s8.bf16 %v976
    %v1013 = vunpack.c.l.s8.bf16 %v977
    %v1014 = vunpack.c.l.s8.bf16 %v978
    %v1015 = vunpack.c.h.s8.bf16 %v977
    %v1016 = vunpack.c.h.s8.bf16 %v978
    %v1017 = vunpack.c.l.s8.bf16 %v979
    %v1018 = vunpack.c.l.s8.bf16 %v980
    %v1019 = vunpack.c.h.s8.bf16 %v979
    %v1020 = vunpack.c.h.s8.bf16 %v980
    %v1021 = vunpack.c.l.s8.bf16 %v981
    %v1022 = vunpack.c.l.s8.bf16 %v982
    %v1023 = vunpack.c.h.s8.bf16 %v981
    %v1024 = vunpack.c.h.s8.bf16 %v982
    %v1025 = vunpack.c.l.s8.bf16 %v983
    %v1026 = vunpack.c.l.s8.bf16 %v984
    %v1027 = vunpack.c.h.s8.bf16 %v983
    %v1028 = vunpack.c.h.s8.bf16 %v984
    %v1029 = vunpack.c.l.s8.bf16 %v985
    %v1030 = vunpack.c.l.s8.bf16 %v986
    %v1031 = vunpack.c.h.s8.bf16 %v985
    %v1032 = vunpack.c.h.s8.bf16 %v986
    %v1033 = vunpack.c.l.s8.bf16 %v987
    %v1034 = vunpack.c.l.s8.bf16 %v988
    %v1035 = vunpack.c.h.s8.bf16 %v987
    %v1036 = vunpack.c.h.s8.bf16 %v988
    %v1037 = vunpack.c.l.s8.bf16 %v989
    %v1038 = vunpack.c.l.s8.bf16 %v990
    %v1039 = vunpack.c.h.s8.bf16 %v989
    %v1040 = vunpack.c.h.s8.bf16 %v990
    %v1041 = vunpack.c.l.s8.bf16 %v991
    %v1042 = vunpack.c.l.s8.bf16 %v992
    %v1043 = vunpack.c.h.s8.bf16 %v991
    %v1044 = vunpack.c.h.s8.bf16 %v992
    %v1045 = vunpack.c.l.s8.bf16 %v993
    %v1046 = vunpack.c.l.s8.bf16 %v994
    %v1047 = vunpack.c.h.s8.bf16 %v993
    %v1048 = vunpack.c.h.s8.bf16 %v994
    %v1049 = vunpack.c.l.s8.bf16 %v995
    %v1050 = vunpack.c.l.s8.bf16 %v996
    %v1051 = vunpack.c.h.s8.bf16 %v995
    %v1052 = vunpack.c.h.s8.bf16 %v996
    %v1053 = vunpack.c.l.s8.bf16 %v997
    %v1054 = vunpack.c.l.s8.bf16 %v998
    %v1055 = vunpack.c.h.s8.bf16 %v997
    %v1056 = vunpack.c.h.s8.bf16 %v998
    %v1057 = vunpack.c.l.s8.bf16 %v999
    %v1058 = vunpack.c.l.s8.bf16 %v1000
    %v1059 = vunpack.c.h.s8.bf16 %v999
    %v1060 = vunpack.c.h.s8.bf16 %v1000
    %v1061 = vunpack.c.l.s8.bf16 %v1001
    %v1062 = vunpack.c.l.s8.bf16 %v1002
    %v1063 = vunpack.c.h.s8.bf16 %v1001
    %v1064 = vunpack.c.h.s8.bf16 %v1002
    %v1065 = vunpack.c.l.s8.bf16 %v1003
    %v1066 = vunpack.c.l.s8.bf16 %v1004
    %v1067 = vunpack.c.h.s8.bf16 %v1003
    %v1068 = vunpack.c.h.s8.bf16 %v1004
    %1069 = vmatprep.subr.bf16.mxu0 %v1006
    %1070 = vmatpush1.bf16.msra.mxu0 %v1005
    %1071 = vmatprep.subr.bf16.mxu0 %v1008
    %1072 = vmatpush1.bf16.msra.mxu0 %v1007
    %1073 = vmatprep.subr.bf16.mxu0 %v1010
    %1074 = vmatpush1.bf16.msra.mxu0 %v1009
    %1075 = vmatprep.subr.bf16.mxu0 %v1012
    %1076 = vmatpush1.bf16.msra.mxu0 %v1011
    %1077 = vmatprep.subr.bf16.mxu0 %v1014
    %1078 = vmatpush1.bf16.msra.mxu0 %v1013
    %1079 = vmatprep.subr.bf16.mxu0 %v1016
    %1080 = vmatpush1.bf16.msra.mxu0 %v1015
    %1081 = vmatprep.subr.bf16.mxu0 %v1018
    %1082 = vmatpush1.bf16.msra.mxu0 %v1017
    %1083 = vmatprep.subr.bf16.mxu0 %v1020
    %1084 = vmatpush1.bf16.msra.mxu0 %v1019
    %1085 = vmatprep.subr.bf16.mxu0 %v1022
    %1086 = vmatpush1.bf16.msra.mxu0 %v1021
    %1087 = vmatprep.subr.bf16.mxu0 %v1024
    %1088 = vmatpush1.bf16.msra.mxu0 %v1023
    %1089 = vmatprep.subr.bf16.mxu0 %v1026
    %1090 = vmatpush1.bf16.msra.mxu0 %v1025
    %1091 = vmatprep.subr.bf16.mxu0 %v1028
    %1092 = vmatpush1.bf16.msra.mxu0 %v1027
    %1093 = vmatprep.subr.bf16.mxu0 %v1030
    %1094 = vmatpush1.bf16.msra.mxu0 %v1029
    %1095 = vmatprep.subr.bf16.mxu0 %v1032
    %1096 = vmatpush1.bf16.msra.mxu0 %v1031
    %1097 = vmatprep.subr.bf16.mxu0 %v1034
    %1098 = vmatpush1.bf16.msra.mxu0 %v1033
    %1099 = vmatprep.subr.bf16.mxu0 %v1036
    %1100 = vmatpush1.bf16.msra.mxu0 %v1035
    %1101 = vmatprep.mubr.bf16.mxu0 %v970
    %1102 = vmatmul.mubr.bf16.gmra.mrb[0].mxu0 %v969
    %v1103 = vpop.f32.mrb[0].mxu0
    %v1104 = vadd.f32 0.0, %v1103
    %v1105 = vpop.f32.mrb[0].mxu0
    %v1106 = vadd.f32 0.0, %v1105
    %v1107 = vpop.f32.mrb[0].mxu0
    %v1108 = vadd.f32 0.0, %v1107
    %v1109 = vpop.f32.mrb[0].mxu0
    %v1110 = vadd.f32 0.0, %v1109
    %1111 = vdwg.mxu0
    %1112 = vmatprep.subr.bf16.mxu0 %v1038
    %1113 = vmatpush1.bf16.msra.mxu0 %v1037
    %1114 = vmatprep.subr.bf16.mxu0 %v1040
    %1115 = vmatpush1.bf16.msra.mxu0 %v1039
    %1116 = vmatprep.subr.bf16.mxu0 %v1042
    %1117 = vmatpush1.bf16.msra.mxu0 %v1041
    %1118 = vmatprep.subr.bf16.mxu0 %v1044
    %1119 = vmatpush1.bf16.msra.mxu0 %v1043
    %1120 = vmatprep.subr.bf16.mxu0 %v1046
    %1121 = vmatpush1.bf16.msra.mxu0 %v1045
    %1122 = vmatprep.subr.bf16.mxu0 %v1048
    %1123 = vmatpush1.bf16.msra.mxu0 %v1047
    %1124 = vmatprep.subr.bf16.mxu0 %v1050
    %1125 = vmatpush1.bf16.msra.mxu0 %v1049
    %1126 = vmatprep.subr.bf16.mxu0 %v1052
    %1127 = vmatpush1.bf16.msra.mxu0 %v1051
    %1128 = vmatprep.subr.bf16.mxu0 %v1054
    %1129 = vmatpush1.bf16.msra.mxu0 %v1053
    %1130 = vmatprep.subr.bf16.mxu0 %v1056
    %1131 = vmatpush1.bf16.msra.mxu0 %v1055
    %1132 = vmatprep.subr.bf16.mxu0 %v1058
    %1133 = vmatpush1.bf16.msra.mxu0 %v1057
    %1134 = vmatprep.subr.bf16.mxu0 %v1060
    %1135 = vmatpush1.bf16.msra.mxu0 %v1059
    %1136 = vmatprep.subr.bf16.mxu0 %v1062
    %1137 = vmatpush1.bf16.msra.mxu0 %v1061
    %1138 = vmatprep.subr.bf16.mxu0 %v1064
    %1139 = vmatpush1.bf16.msra.mxu0 %v1063
    %1140 = vmatprep.subr.bf16.mxu0 %v1066
    %1141 = vmatpush1.bf16.msra.mxu0 %v1065
    %1142 = vmatprep.subr.bf16.mxu0 %v1068
    %1143 = vmatpush1.bf16.msra.mxu0 %v1067
    %1144 = vmatprep.mubr.bf16.mxu0 %v972
    %1145 = vmatmul.mubr.bf16.gmra.mrb[0].mxu0 %v971
    %v1146 = vpop.f32.mrb[0].mxu0
    %v1147 = vadd.f32 %v1104, %v1146
    %v1148 = vpop.f32.mrb[0].mxu0
    %v1149 = vadd.f32 %v1106, %v1148
    %v1150 = vpop.f32.mrb[0].mxu0
    %v1151 = vadd.f32 %v1108, %v1150
    %v1152 = vpop.f32.mrb[0].mxu0
    %v1153 = vadd.f32 %v1110, %v1152
    %1154 = vdwg.mxu0
    %v1155 = vadd.f32 %v1147, %v1151
    %v1156 = vrot.slane %v1155, 4
    %v1157 = vadd.f32 %v1155, %v1156
    %v1158 = vrot.slane %v1157, 2
    %v1159 = vadd.f32 %v1157, %v1158
    %v1160 = vrot.slane %v1159, 1
    %v1161 = vadd.f32 %v1159, %v1160
    %v1162 = vadd.f32 %v1149, %v1153
    %v1163 = vrot.slane %v1162, 4
    %v1164 = vadd.f32 %v1162, %v1163
    %v1165 = vrot.slane %v1164, 2
    %v1166 = vadd.f32 %v1164, %v1165
    %v1167 = vrot.slane %v1166, 1
    %v1168 = vadd.f32 %v1166, %v1167
    %v1169 = vmul.f32 %v1161, %v880
    %v1170 = vmul.f32 %v1168, %v880
    %v1171 = vmul.f32 %v1147, %v1147
    %v1172 = vmul.f32 %v1149, %v1149
    %v1173 = vmul.f32 %v1151, %v1151
    %v1174 = vmul.f32 %v1153, %v1153
    %v1175 = vadd.f32 %v1171, %v1173
    %v1176 = vrot.slane %v1175, 4
    %v1177 = vadd.f32 %v1175, %v1176
    %v1178 = vrot.slane %v1177, 2
    %v1179 = vadd.f32 %v1177, %v1178
    %v1180 = vrot.slane %v1179, 1
    %v1181 = vadd.f32 %v1179, %v1180
    %v1182 = vadd.f32 %v1172, %v1174
    %v1183 = vrot.slane %v1182, 4
    %v1184 = vadd.f32 %v1182, %v1183
    %v1185 = vrot.slane %v1184, 2
    %v1186 = vadd.f32 %v1184, %v1185
    %v1187 = vrot.slane %v1186, 1
    %v1188 = vadd.f32 %v1186, %v1187
    %v1189 = vmul.f32 %v1181, %v880
    %v1190 = vmul.f32 %v1188, %v880
    %v1191 = vmul.f32 %v1169, %v1169
    %v1192 = vmul.f32 %v1170, %v1170
    %v1193 = vsub.f32 %v1189, %v1191
    %v1194 = vsub.f32 %v1190, %v1192
    %v1195 = vmax.f32 %v1193, 0.0
    %v1196 = vmax.f32 %v1194, 0.0
    %v1197 = vsub.f32 %v1147, %v1169
    %v1198 = vsub.f32 %v1149, %v1170
    %v1199 = vsub.f32 %v1151, %v1169
    %v1200 = vsub.f32 %v1153, %v1170
    %v1201 = vadd.f32 %v1195, 1e-05
    %v1202 = vadd.f32 %v1196, 1e-05
    %v1203 = vrsqrt.pop %v1201
    %v1204 = vrsqrt.pop %v1202
    %v1205 = vmul.f32 %v1197, %v1203
    %v1206 = vmul.f32 %v1198, %v1204
    %v1207 = vmul.f32 %v1199, %v1203
    %v1208 = vmul.f32 %v1200, %v1204
    %v1209 = vmax.f32 %v1205, 0.0
    %v1210 = vmax.f32 %v1206, 0.0
    %v1211 = vmax.f32 %v1207, 0.0
    %v1212 = vmax.f32 %v1208, 0.0
    %v1213 = vpack.c.bf16 %v1211, %v1209
    %v1214 = vpack.c.bf16 %v1212, %v1210
    %v1215 = vld [vmem:[#allocation8] sm:$0xff]
    %v1216 = vld [vmem:[#allocation8 + $0x8] sm:$0xff]
    %v1217 = vld [vmem:[#allocation8 + $0x10] sm:$0xff]
    %v1218 = vld [vmem:[#allocation8 + $0x18] sm:$0xff]
    %v1219 = vld [vmem:[#allocation8 + $0x20] sm:$0xff]
    %v1220 = vld [vmem:[#allocation8 + $0x28] sm:$0xff]
    %v1221 = vld [vmem:[#allocation8 + $0x30] sm:$0xff]
    %v1222 = vld [vmem:[#allocation8 + $0x38] sm:$0xff]
    %v1223 = vld [vmem:[#allocation8 + $0x40] sm:$0xff]
    %v1224 = vld [vmem:[#allocation8 + $0x48] sm:$0xff]
    %v1225 = vld [vmem:[#allocation8 + $0x50] sm:$0xff]
    %v1226 = vld [vmem:[#allocation8 + $0x58] sm:$0xff]
    %v1227 = vld [vmem:[#allocation8 + $0x60] sm:$0xff]
    %v1228 = vld [vmem:[#allocation8 + $0x68] sm:$0xff]
    %v1229 = vld [vmem:[#allocation8 + $0x70] sm:$0xff]
    %v1230 = vld [vmem:[#allocation8 + $0x78] sm:$0xff]
    %v1231 = vld [vmem:[#allocation8 + $0x80] sm:$0xff]
    %v1232 = vld [vmem:[#allocation8 + $0x88] sm:$0xff]
    %v1233 = vld [vmem:[#allocation8 + $0x90] sm:$0xff]
    %v1234 = vld [vmem:[#allocation8 + $0x98] sm:$0xff]
    %v1235 = vld [vmem:[#allocation8 + $0xa0] sm:$0xff]
    %v1236 = vld [vmem:[#allocation8 + $0xa8] sm:$0xff]
    %v1237 = vld [vmem:[#allocation8 + $0xb0] sm:$0xff]
    %v1238 = vld [vmem:[#allocation8 + $0xb8] sm:$0xff]
    %v1239 = vld [vmem:[#allocation8 + $0xc0] sm:$0xff]
    %v1240 = vld [vmem:[#allocation8 + $0xc8] sm:$0xff]
    %v1241 = vld [vmem:[#allocation8 + $0xd0] sm:$0xff]
    %v1242 = vld [vmem:[#allocation8 + $0xd8] sm:$0xff]
    %v1243 = vld [vmem:[#allocation8 + $0xe0] sm:$0xff]
    %v1244 = vld [vmem:[#allocation8 + $0xe8] sm:$0xff]
    %v1245 = vld [vmem:[#allocation8 + $0xf0] sm:$0xff]
    %v1246 = vld [vmem:[#allocation8 + $0xf8] sm:$0xff]
    %v1247 = vld [vmem:[%s4] sm:$0x3]
    %v1249 = vlaneseq
    %v1250 = vshrl.u32 %v1249, 7
    %v1251 = vsub.s32 0, %v1250
    %v1252 = vrot.slane %v1247, %v1251
    %v1253 = vlaneseq
    %v1254 = vshrl.u32 %v1253, 7
    %v1255 = vsub.s32 1, %v1254
    %v1256 = vrot.slane %v1247, %v1255
    %v1291 = vunpack.c.l.b16 %v1215
    %v1292 = vunpack.c.h.b16 %v1215
    %v1293 = vunpack.c.l.b16 %v1216
    %v1294 = vunpack.c.h.b16 %v1216
    %v1295 = vunpack.c.l.b16 %v1217
    %v1296 = vunpack.c.h.b16 %v1217
    %v1297 = vunpack.c.l.b16 %v1218
    %v1298 = vunpack.c.h.b16 %v1218
    %v1299 = vunpack.c.l.b16 %v1219
    %v1300 = vunpack.c.h.b16 %v1219
    %v1301 = vunpack.c.l.b16 %v1220
    %v1302 = vunpack.c.h.b16 %v1220
    %v1303 = vunpack.c.l.b16 %v1221
    %v1304 = vunpack.c.h.b16 %v1221
    %v1305 = vunpack.c.l.b16 %v1222
    %v1306 = vunpack.c.h.b16 %v1222
    %v1307 = vunpack.c.l.b16 %v1223
    %v1308 = vunpack.c.h.b16 %v1223
    %v1309 = vunpack.c.l.b16 %v1224
    %v1310 = vunpack.c.h.b16 %v1224
    %v1311 = vunpack.c.l.b16 %v1225
    %v1312 = vunpack.c.h.b16 %v1225
    %v1313 = vunpack.c.l.b16 %v1226
    %v1314 = vunpack.c.h.b16 %v1226
    %v1315 = vunpack.c.l.b16 %v1227
    %v1316 = vunpack.c.h.b16 %v1227
    %v1317 = vunpack.c.l.b16 %v1228
    %v1318 = vunpack.c.h.b16 %v1228
    %v1319 = vunpack.c.l.b16 %v1229
    %v1320 = vunpack.c.h.b16 %v1229
    %v1321 = vunpack.c.l.b16 %v1230
    %v1322 = vunpack.c.h.b16 %v1230
    %v1323 = vunpack.c.l.b16 %v1231
    %v1324 = vunpack.c.h.b16 %v1231
    %v1325 = vunpack.c.l.b16 %v1232
    %v1326 = vunpack.c.h.b16 %v1232
    %v1327 = vunpack.c.l.b16 %v1233
    %v1328 = vunpack.c.h.b16 %v1233
    %v1329 = vunpack.c.l.b16 %v1234
    %v1330 = vunpack.c.h.b16 %v1234
    %v1331 = vunpack.c.l.b16 %v1235
    %v1332 = vunpack.c.h.b16 %v1235
    %v1333 = vunpack.c.l.b16 %v1236
    %v1334 = vunpack.c.h.b16 %v1236
    %v1335 = vunpack.c.l.b16 %v1237
    %v1336 = vunpack.c.h.b16 %v1237
    %v1337 = vunpack.c.l.b16 %v1238
    %v1338 = vunpack.c.h.b16 %v1238
    %v1339 = vunpack.c.l.b16 %v1239
    %v1340 = vunpack.c.h.b16 %v1239
    %v1341 = vunpack.c.l.b16 %v1240
    %v1342 = vunpack.c.h.b16 %v1240
    %v1343 = vunpack.c.l.b16 %v1241
    %v1344 = vunpack.c.h.b16 %v1241
    %v1345 = vunpack.c.l.b16 %v1242
    %v1346 = vunpack.c.h.b16 %v1242
    %v1347 = vunpack.c.l.b16 %v1243
    %v1348 = vunpack.c.h.b16 %v1243
    %v1349 = vunpack.c.l.b16 %v1244
    %v1350 = vunpack.c.h.b16 %v1244
    %v1351 = vunpack.c.l.b16 %v1245
    %v1352 = vunpack.c.h.b16 %v1245
    %v1353 = vunpack.c.l.b16 %v1246
    %v1354 = vunpack.c.h.b16 %v1246
    %v1355 = vpack.c.b16 %v1293, %v1291
    %v1356 = vpack.c.b16 %v1294, %v1292
    %v1357 = vpack.c.b16 %v1297, %v1295
    %v1358 = vpack.c.b16 %v1298, %v1296
    %v1359 = vpack.c.b16 %v1301, %v1299
    %v1360 = vpack.c.b16 %v1302, %v1300
    %v1361 = vpack.c.b16 %v1305, %v1303
    %v1362 = vpack.c.b16 %v1306, %v1304
    %v1363 = vpack.c.b16 %v1309, %v1307
    %v1364 = vpack.c.b16 %v1310, %v1308
    %v1365 = vpack.c.b16 %v1313, %v1311
    %v1366 = vpack.c.b16 %v1314, %v1312
    %v1367 = vpack.c.b16 %v1317, %v1315
    %v1368 = vpack.c.b16 %v1318, %v1316
    %v1369 = vpack.c.b16 %v1321, %v1319
    %v1370 = vpack.c.b16 %v1322, %v1320
    %v1371 = vpack.c.b16 %v1325, %v1323
    %v1372 = vpack.c.b16 %v1326, %v1324
    %v1373 = vpack.c.b16 %v1329, %v1327
    %v1374 = vpack.c.b16 %v1330, %v1328
    %v1375 = vpack.c.b16 %v1333, %v1331
    %v1376 = vpack.c.b16 %v1334, %v1332
    %v1377 = vpack.c.b16 %v1337, %v1335
    %v1378 = vpack.c.b16 %v1338, %v1336
    %v1379 = vpack.c.b16 %v1341, %v1339
    %v1380 = vpack.c.b16 %v1342, %v1340
    %v1381 = vpack.c.b16 %v1345, %v1343
    %v1382 = vpack.c.b16 %v1346, %v1344
    %v1383 = vpack.c.b16 %v1349, %v1347
    %v1384 = vpack.c.b16 %v1350, %v1348
    %v1385 = vpack.c.b16 %v1353, %v1351
    %v1386 = vpack.c.b16 %v1354, %v1352
    %1419 = vmatprep.subr.bf16.mxu0 %v1356
    %1420 = vmatpush1.bf16.msra.mxu0 %v1355
    %1421 = vmatprep.subr.bf16.mxu0 %v1358
    %1422 = vmatpush1.bf16.msra.mxu0 %v1357
    %1423 = vmatprep.subr.bf16.mxu0 %v1360
    %1424 = vmatpush1.bf16.msra.mxu0 %v1359
    %1425 = vmatprep.subr.bf16.mxu0 %v1362
    %1426 = vmatpush1.bf16.msra.mxu0 %v1361
    %1427 = vmatprep.subr.bf16.mxu0 %v1364
    %1428 = vmatpush1.bf16.msra.mxu0 %v1363
    %1429 = vmatprep.subr.bf16.mxu0 %v1366
    %1430 = vmatpush1.bf16.msra.mxu0 %v1365
    %1431 = vmatprep.subr.bf16.mxu0 %v1368
    %1432 = vmatpush1.bf16.msra.mxu0 %v1367
    %1433 = vmatprep.subr.bf16.mxu0 %v1370
    %1434 = vmatpush1.bf16.msra.mxu0 %v1369
    %1435 = vmatprep.subr.bf16.mxu0 %v1372
    %1436 = vmatpush1.bf16.msra.mxu0 %v1371
    %1437 = vmatprep.subr.bf16.mxu0 %v1374
    %1438 = vmatpush1.bf16.msra.mxu0 %v1373
    %1439 = vmatprep.subr.bf16.mxu0 %v1376
    %1440 = vmatpush1.bf16.msra.mxu0 %v1375
    %1441 = vmatprep.subr.bf16.mxu0 %v1378
    %1442 = vmatpush1.bf16.msra.mxu0 %v1377
    %1443 = vmatprep.subr.bf16.mxu0 %v1380
    %1444 = vmatpush1.bf16.msra.mxu0 %v1379
    %1445 = vmatprep.subr.bf16.mxu0 %v1382
    %1446 = vmatpush1.bf16.msra.mxu0 %v1381
    %1447 = vmatprep.subr.bf16.mxu0 %v1384
    %1448 = vmatpush1.bf16.msra.mxu0 %v1383
    %1449 = vmatprep.subr.bf16.mxu0 %v1386
    %1450 = vmatpush1.bf16.msra.mxu0 %v1385
    %1451 = vmatprep.mubr.bf16.mxu0 %v1214
    %1452 = vmatmul.mubr.bf16.gmra.mrb[0].mxu0 %v1213
    %v1453 = vpop.f32.mrb[0].mxu0
    %v1454 = vadd.f32 %v1252, %v1453
    %v1455 = vpop.f32.mrb[0].mxu0
    %v1456 = vadd.f32 %v1256, %v1455
    %v1457 = vpop.f32.mrb[0].mxu0
    %v1458 = vadd.f32 %v1252, %v1457
    %v1459 = vpop.f32.mrb[0].mxu0
    %v1460 = vadd.f32 %v1256, %v1459
    %1461 = vdwg.mxu0
    %v1462 = vtanh.pop %v1454
    %v1463 = vtanh.pop %v1456
    %v1464 = vtanh.pop %v1458
    %v1465 = vtanh.pop %v1460
    %1466 = vst [vmem:[#allocation10] sm:$0xff] %v1462
    %1467 = vst [vmem:[#allocation10 + $0x8] sm:$0xff] %v1463
    %1468 = vst [vmem:[#allocation10 + $0x10] sm:$0xff] %v1464
    %1469 = vst [vmem:[#allocation10 + $0x18] sm:$0xff] %v1465
    // Predicated region
    $region38: #{tpu_custom_call.1} parent=1 // pred_check
      _
    $region39: #{tpu_custom_call.1} parent=1 // pred_check_branch
      %1471 = sbr.rel (0) target = $region41
    $region40: #{tpu_custom_call.1} parent=1 // pred_region
      %s1473 = ssub.s32 512, 512
      %1474 = vsyncadd [#allocation4], %s1473
      %s1475 = sshll.u32 [#allocation10], 4
      %s1476 = int_to_ptr.vmem [resolvable:$true] %s1475
      %1481 = dma.vmem_to_hbm [thread:$0]  %s1476, 512, %s5, [#allocation4], 256, 256, 16
    $region41: #{tpu_custom_call.1} parent=1 // pred_fallthru
      _
    // Predicated region
    $region42: #{tpu_custom_call.1} parent=1 // pred_check
      _
    $region43: #{tpu_custom_call.1} parent=1 // pred_check_branch
      %1483 = sbr.rel (0) target = $region45
    $region44: #{tpu_custom_call.1} parent=1 // pred_region
      %1484 = dma.done [#allocation4], 512
    $region45: #{tpu_custom_call.1} parent=1 // pred_fallthru
      _
    %1485 = vsyncpa [#allocation3], 1
    %1486 = vsyncpa [#allocation6], 1
    %1487 = vsyncpa [#allocation9], 1
    %1488 = vsyncpa [#allocation4], 1

</llo_original>
